<compile_context>
chip_gen: v7x
topology: tpu7x:2x2x1
jax: 0.10.0
libtpu: 0.0.40
codegen_flags: <defaults>
</compile_context>

<pallas_src>
import math
from functools import partial

import jax
import jax.numpy as jnp
from jax.experimental import pallas as pl
from jax.experimental.pallas import tpu as pltpu


def ctrgc_kernel(alpha, T, V,
                 x_ref, w12_ref, b12_ref, w3_ref, b3_ref, w4_ref, b4_ref,
                 avg_ref, exp_ref, at_ref, o_ref):
    block_n, Cin, TV = x_ref.shape
    R = w12_ref.shape[0] // 2
    Cout = w3_ref.shape[0]

    # Hoist all small weight/constant loads out of the per-element loop.
    w12 = w12_ref[...]
    b12 = b12_ref[...]
    w3 = w3_ref[...]
    b3 = b3_ref[...]
    w4 = w4_ref[...]
    b4 = b4_ref[...]
    avg = avg_ref[...]        # (T*V, V)  temporal-mean matrix
    exp_m = exp_ref[...]      # (2V, V*V) +/-1 pairwise-difference expansion
    a_t = at_ref[...]         # (1, V*V)  flattened A^T

    def body(i, carry):
        xb = x_ref[i]                                                      # (Cin, T*V) lane dense

        # temporal mean as an MXU op: xm[c, v] = mean_t x[c, t, v]
        xm = jnp.dot(xb, avg, preferred_element_type=jnp.float32)          # (Cin, V)

        # fused conv1/conv2 on the temporally averaged input
        y12 = jnp.dot(w12, xm, preferred_element_type=jnp.float32) + b12   # (2R, V)
        ycat = jnp.concatenate([y12[:R, :], y12[R:, :]], axis=-1)          # (R, 2V)

        # pairwise joint difference, built lane dense:
        #   d[r, v*V + u] = tanh(y1[r, u] - y2[r, v])
        d = jnp.tanh(jnp.dot(ycat, exp_m,
                             preferred_element_type=jnp.float32))          # (R, V*V)

        # conv4 (R -> Cout), alpha scale, add static adjacency (transposed, flat)
        adj_t = jnp.dot(w4, d, preferred_element_type=jnp.float32) + b4    # (Cout, V*V)
        adj_t = adj_t * alpha + a_t                                        # adjT[c, v*V+u]

        # conv3 on the full lane-dense input
        y3 = jnp.dot(w3, xb, preferred_element_type=jnp.float32) + b3      # (Cout, T*V)

        # out[c, t, u] = sum_v y3[c, t, v] * adjT[c, v, u]  (batched over c;
        # contraction on LHS lane / RHS sublane -> MXU-friendly, no transpose)
        out = jax.lax.dot_general(
            y3.reshape(Cout, T, V), adj_t.reshape(Cout, V, V),
            dimension_numbers=(((2,), (1,)), ((0,), (0,))),
            preferred_element_type=jnp.float32)                            # (Cout, T, V)

        # store lane dense (last dim = T*V) -> unmasked vector stores
        o_ref[i] = out.reshape(Cout, TV).astype(o_ref.dtype)
        return carry

    jax.lax.fori_loop(0, block_n, body, None, unroll=True)


def _largest_divisor_leq(n, cap):
    for d in range(min(n, cap), 0, -1):
        if n % d == 0:
            return d
    return 1


def ctrgc_forward(x, params, A, alpha=1.0, block_n=None):
    """x: (N, Cin, T, V) float32 -> (N, Cout, T, V) float32 (matches PyTorch NCHW)."""
    N, Cin, T, V = x.shape
    w1, b1, w2, b2, w3, b3, w4, b4 = params
    Cout = w3.shape[0]
    TV = T * V

    # ---- wrapper-side layout plumbing: lane-dense last dim = T*V ----
    x_flat = x.reshape(N, Cin, TV).astype(jnp.float32)

    # fused conv1/conv2 weights & biases
    w12 = jnp.concatenate([w1, w2], axis=0)                                # (2R, Cin)
    b12 = jnp.concatenate([b1, b2], axis=0)                                # (2R, 1)

    # constant matrix folding the temporal mean into a matmul: (T*V, V)
    v_of = jnp.arange(TV, dtype=jnp.int32) % V
    avg_mat = (v_of[:, None] == jnp.arange(V, dtype=jnp.int32)[None, :]
               ).astype(jnp.float32) / float(T)

    # +/-1 expansion matrix: ([y1 | y2] @ exp_mat)[r, v*V+u] = y1[r, u] - y2[r, v]
    col = jnp.arange(V * V, dtype=jnp.int32)
    u_col, v_col = col % V, col // V
    rows = jnp.arange(2 * V, dtype=jnp.int32)
    plus = (rows[:, None] == u_col[None, :]) & (rows[:, None] < V)
    minus = ((rows[:, None] - V) == v_col[None, :]) & (rows[:, None] >= V)
    exp_mat = plus.astype(jnp.float32) - minus.astype(jnp.float32)         # (2V, V*V)

    # static adjacency, transposed and flattened so adjT[c, v*V+u] += A[u, v]
    a_t_flat = jnp.transpose(A).reshape(1, V * V).astype(jnp.float32)

    # ---- choose how many batch elements each grid step processes ----
    if block_n is None:
        vmem_budget = 8 * 1024 * 1024             # conservative; fits v7x scoped VMEM
        per_elem = 4 * TV * (2 * Cin + 4 * Cout)  # double-buffered in/out + intermediates
        cap = max(1, vmem_budget // per_elem)
        if N >= 2:                                # keep >= 2 grid steps for megacore sharding
            cap = min(cap, max(1, N // 2))
        block_n = _largest_divisor_leq(N, cap)
    grid = (N // block_n,)

    kernel = partial(ctrgc_kernel, float(alpha), T, V)

    out_flat = pl.pallas_call(
        kernel,
        out_shape=jax.ShapeDtypeStruct((N, Cout, TV), jnp.float32),
        grid_spec=pl.GridSpec(
            grid=grid,
            in_specs=[
                pl.BlockSpec((block_n, Cin, TV), lambda n: (n, 0, 0)),
                pl.BlockSpec(w12.shape, lambda n: (0, 0)),
                pl.BlockSpec(b12.shape, lambda n: (0, 0)),
                pl.BlockSpec(w3.shape, lambda n: (0, 0)),
                pl.BlockSpec(b3.shape, lambda n: (0, 0)),
                pl.BlockSpec(w4.shape, lambda n: (0, 0)),
                pl.BlockSpec(b4.shape, lambda n: (0, 0)),
                pl.BlockSpec(avg_mat.shape, lambda n: (0, 0)),
                pl.BlockSpec(exp_mat.shape, lambda n: (0, 0)),
                pl.BlockSpec(a_t_flat.shape, lambda n: (0, 0)),
            ],
            out_specs=pl.BlockSpec((block_n, Cout, TV), lambda n: (n, 0, 0)),
        ),
        compiler_params=pltpu.CompilerParams(
            dimension_semantics=("parallel",)),
    )(x_flat, w12, b12, w3, b3, w4, b4, avg_mat, exp_mat, a_t_flat)

    return out_flat.reshape(N, Cout, T, V)


def ctrgc_reference(x, params, A, alpha=1.0):
    """Pure-JAX reference mirroring the PyTorch forward exactly (for validation)."""
    w1, b1, w2, b2, w3, b3, w4, b4 = params

    def conv1x1(inp, w, b):
        return jnp.einsum('oc,nctv->notv', w, inp) + b.reshape(1, -1, 1, 1)

    x1 = conv1x1(x, w1, b1).mean(-2)                               # (N, R, V)
    x2 = conv1x1(x, w2, b2).mean(-2)                               # (N, R, V)
    x3 = conv1x1(x, w3, b3)                                        # (N, Cout, T, V)
    x1 = jnp.tanh(x1[..., :, None] - x2[..., None, :])             # (N, R, V, V)
    x1 = jnp.einsum('or,nruv->nouv', w4, x1) + b4.reshape(1, -1, 1, 1)
    x1 = x1 * alpha + A[None, None]
    return jnp.einsum('ncuv,nctv->nctu', x1, x3)


def init_params(key, in_channels, out_channels, rel_reduction=8):
    # mirrors CTRGC.__init__ channel logic + conv_init (kaiming fan_out, zero bias)
    if in_channels in (3, 9):
        rel_channels = 8
    else:
        rel_channels = in_channels // rel_reduction

    def kaiming(k, out_ch, in_ch):
        std = math.sqrt(2.0 / out_ch)   # fan_out = out_ch * 1 * 1 for a 1x1 conv
        return jax.random.normal(k, (out_ch, in_ch), dtype=jnp.float32) * std

    k1, k2, k3, k4 = jax.random.split(key, 4)
    w1 = kaiming(k1, rel_channels, in_channels)
    w2 = kaiming(k2, rel_channels, in_channels)
    w3 = kaiming(k3, out_channels, in_channels)
    w4 = kaiming(k4, out_channels, rel_channels)
    b1 = jnp.zeros((rel_channels, 1), jnp.float32)
    b2 = jnp.zeros((rel_channels, 1), jnp.float32)
    b3 = jnp.zeros((out_channels, 1), jnp.float32)
    b4 = jnp.zeros((out_channels, 1), jnp.float32)
    return (w1, b1, w2, b2, w3, b3, w4, b4)


if __name__ == "__main__":
    # small shapes: batch=2, in_channels=3 (-> rel_channels=8), out_channels=16,
    # T=8 frames, V=16 joints (T*V = 128 -> lane-dense blocks)
    N, Cin, Cout, T, V = 2, 3, 16, 8, 16
    alpha = 0.5   # non-trivial alpha to exercise the scaling path

    key = jax.random.PRNGKey(0)
    kx, ka, kp, kb = jax.random.split(key, 4)
    x = jax.random.normal(kx, (N, Cin, T, V), dtype=jnp.float32)
    A = jax.random.normal(ka, (V, V), dtype=jnp.float32) * 0.1

    w1, b1, w2, b2, w3, b3, w4, b4 = init_params(kp, Cin, Cout)
    # conv_init zeros the biases; perturb them so the bias path is actually validated.
    kb1, kb2, kb3, kb4 = jax.random.split(kb, 4)
    b1 = 0.1 * jax.random.normal(kb1, b1.shape, jnp.float32)
    b2 = 0.1 * jax.random.normal(kb2, b2.shape, jnp.float32)
    b3 = 0.1 * jax.random.normal(kb3, b3.shape, jnp.float32)
    b4 = 0.1 * jax.random.normal(kb4, b4.shape, jnp.float32)
    params = (w1, b1, w2, b2, w3, b3, w4, b4)

    out = jax.block_until_ready(ctrgc_forward(x, params, A, alpha))
    ref = jax.block_until_ready(ctrgc_reference(x, params, A, alpha))

    assert out.shape == (N, Cout, T, V), out.shape
    max_err = float(jnp.max(jnp.abs(out - ref)))
    assert jnp.allclose(out, ref, rtol=1e-2, atol=1e-2), max_err

    print("KERNEL_OK")
</pallas_src>

<mosaic_0001>
module attributes {stable_mosaic.version = 11 : i64} {
  func.func @ctrgc_kernel(%arg0: i32, %arg1: memref<1x3x128xf32, #tpu.memory_space<vmem>>, %arg2: memref<16x3xf32, #tpu.memory_space<vmem>>, %arg3: memref<16x1xf32, #tpu.memory_space<vmem>>, %arg4: memref<16x3xf32, #tpu.memory_space<vmem>>, %arg5: memref<16x1xf32, #tpu.memory_space<vmem>>, %arg6: memref<16x8xf32, #tpu.memory_space<vmem>>, %arg7: memref<16x1xf32, #tpu.memory_space<vmem>>, %arg8: memref<128x16xf32, #tpu.memory_space<vmem>>, %arg9: memref<32x256xf32, #tpu.memory_space<vmem>>, %arg10: memref<1x256xf32, #tpu.memory_space<vmem>>, %arg11: memref<1x16x128xf32, #tpu.memory_space<vmem>>) attributes {dimension_semantics = [#tpu.dimension_semantics<parallel>], iteration_bounds = array<i64: 2>, scalar_prefetch = 0 : i64, scratch_operands = 0 : i64, tpu.core_type = #tpu.core_type<tc>, window_params = [{transform_indices = @transform_0, window_bounds = array<i64: 1, 3, 128>}, {pipeline_mode = #tpu.pipeline_mode<synchronous>, transform_indices = @transform_1, window_bounds = array<i64: 16, 3>}, {pipeline_mode = #tpu.pipeline_mode<synchronous>, transform_indices = @transform_2, window_bounds = array<i64: 16, 1>}, {pipeline_mode = #tpu.pipeline_mode<synchronous>, transform_indices = @transform_3, window_bounds = array<i64: 16, 3>}, {pipeline_mode = #tpu.pipeline_mode<synchronous>, transform_indices = @transform_4, window_bounds = array<i64: 16, 1>}, {pipeline_mode = #tpu.pipeline_mode<synchronous>, transform_indices = @transform_5, window_bounds = array<i64: 16, 8>}, {pipeline_mode = #tpu.pipeline_mode<synchronous>, transform_indices = @transform_6, window_bounds = array<i64: 16, 1>}, {pipeline_mode = #tpu.pipeline_mode<synchronous>, transform_indices = @transform_7, window_bounds = array<i64: 128, 16>}, {pipeline_mode = #tpu.pipeline_mode<synchronous>, transform_indices = @transform_8, window_bounds = array<i64: 32, 256>}, {pipeline_mode = #tpu.pipeline_mode<synchronous>, transform_indices = @transform_9, window_bounds = array<i64: 1, 256>}, {transform_indices = @transform_10, window_bounds = array<i64: 1, 16, 128>}]} {
    %c0 = arith.constant 0 : index
    %c0_0 = arith.constant 0 : index
    %0 = vector.load %arg2[%c0, %c0_0] : memref<16x3xf32, #tpu.memory_space<vmem>>, vector<16x3xf32>
    %c0_1 = arith.constant 0 : index
    %c0_2 = arith.constant 0 : index
    %1 = vector.load %arg3[%c0_1, %c0_2] : memref<16x1xf32, #tpu.memory_space<vmem>>, vector<16x1xf32>
    %c0_3 = arith.constant 0 : index
    %c0_4 = arith.constant 0 : index
    %2 = vector.load %arg4[%c0_3, %c0_4] : memref<16x3xf32, #tpu.memory_space<vmem>>, vector<16x3xf32>
    %c0_5 = arith.constant 0 : index
    %c0_6 = arith.constant 0 : index
    %3 = vector.load %arg5[%c0_5, %c0_6] : memref<16x1xf32, #tpu.memory_space<vmem>>, vector<16x1xf32>
    %c0_7 = arith.constant 0 : index
    %c0_8 = arith.constant 0 : index
    %4 = vector.load %arg6[%c0_7, %c0_8] : memref<16x8xf32, #tpu.memory_space<vmem>>, vector<16x8xf32>
    %c0_9 = arith.constant 0 : index
    %c0_10 = arith.constant 0 : index
    %5 = vector.load %arg7[%c0_9, %c0_10] : memref<16x1xf32, #tpu.memory_space<vmem>>, vector<16x1xf32>
    %c0_11 = arith.constant 0 : index
    %c0_12 = arith.constant 0 : index
    %6 = vector.load %arg8[%c0_11, %c0_12] : memref<128x16xf32, #tpu.memory_space<vmem>>, vector<128x16xf32>
    %c0_13 = arith.constant 0 : index
    %c0_14 = arith.constant 0 : index
    %7 = vector.load %arg9[%c0_13, %c0_14] : memref<32x256xf32, #tpu.memory_space<vmem>>, vector<32x256xf32>
    %c0_15 = arith.constant 0 : index
    %c0_16 = arith.constant 0 : index
    %8 = vector.load %arg10[%c0_15, %c0_16] : memref<1x256xf32, #tpu.memory_space<vmem>>, vector<1x256xf32>
    %c0_i32 = arith.constant 0 : i32
    %9 = arith.index_cast %c0_i32 : i32 to index
    %c0_17 = arith.constant 0 : index
    %c0_18 = arith.constant 0 : index
    %10 = vector.load %arg1[%9, %c0_17, %c0_18] : memref<1x3x128xf32, #tpu.memory_space<vmem>>, vector<1x3x128xf32>
    %11 = vector.shape_cast %10 : vector<1x3x128xf32> to vector<3x128xf32>
    %cst = arith.constant dense<0.000000e+00> : vector<3x16xf32>
    %12 = tpu.matmul %11, %6, %cst {dimension_numbers = #tpu.dot_dimension_numbers<[1], [0], [0], [1], [0, 0, 1, 1], [], []>} : vector<3x128xf32>, vector<128x16xf32>, vector<3x16xf32> -> vector<3x16xf32>
    %cst_19 = arith.constant dense<0.000000e+00> : vector<16x16xf32>
    %13 = tpu.matmul %0, %12, %cst_19 {dimension_numbers = #tpu.dot_dimension_numbers<[1], [0], [0], [1], [0, 0, 1, 1], [], []>} : vector<16x3xf32>, vector<3x16xf32>, vector<16x16xf32> -> vector<16x16xf32>
    %14 = vector.broadcast %1 : vector<16x1xf32> to vector<16x16xf32>
    %15 = arith.addf %13, %14 : vector<16x16xf32>
    %16 = vector.extract_strided_slice %15 {offsets = [0, 0], sizes = [8, 16], strides = [1, 1]} : vector<16x16xf32> to vector<8x16xf32>
    %17 = vector.extract_strided_slice %15 {offsets = [8, 0], sizes = [8, 16], strides = [1, 1]} : vector<16x16xf32> to vector<8x16xf32>
    %18 = tpu.concatenate %16, %17 in 1 : vector<8x16xf32>, vector<8x16xf32> -> vector<8x32xf32>
    %cst_20 = arith.constant dense<0.000000e+00> : vector<8x256xf32>
    %19 = tpu.matmul %18, %7, %cst_20 {dimension_numbers = #tpu.dot_dimension_numbers<[1], [0], [0], [1], [0, 0, 1, 1], [], []>} : vector<8x32xf32>, vector<32x256xf32>, vector<8x256xf32> -> vector<8x256xf32>
    %20 = math.tanh %19 : vector<8x256xf32>
    %cst_21 = arith.constant dense<0.000000e+00> : vector<16x256xf32>
    %21 = tpu.matmul %4, %20, %cst_21 {dimension_numbers = #tpu.dot_dimension_numbers<[1], [0], [0], [1], [0, 0, 1, 1], [], []>} : vector<16x8xf32>, vector<8x256xf32>, vector<16x256xf32> -> vector<16x256xf32>
    %22 = vector.broadcast %5 : vector<16x1xf32> to vector<16x256xf32>
    %23 = arith.addf %21, %22 : vector<16x256xf32>
    %cst_22 = arith.constant 5.000000e-01 : f32
    %24 = vector.broadcast %cst_22 : f32 to vector<16x256xf32>
    %25 = arith.mulf %23, %24 : vector<16x256xf32>
    %26 = vector.broadcast %8 : vector<1x256xf32> to vector<16x256xf32>
    %27 = arith.addf %25, %26 : vector<16x256xf32>
    %cst_23 = arith.constant dense<0.000000e+00> : vector<16x128xf32>
    %28 = tpu.matmul %2, %11, %cst_23 {dimension_numbers = #tpu.dot_dimension_numbers<[1], [0], [0], [1], [0, 0, 1, 1], [], []>} : vector<16x3xf32>, vector<3x128xf32>, vector<16x128xf32> -> vector<16x128xf32>
    %29 = vector.broadcast %3 : vector<16x1xf32> to vector<16x128xf32>
    %30 = arith.addf %28, %29 : vector<16x128xf32>
    %31 = vector.shape_cast %30 : vector<16x128xf32> to vector<16x8x16xf32>
    %32 = vector.shape_cast %27 : vector<16x256xf32> to vector<16x16x16xf32>
    %cst_24 = arith.constant dense<0.000000e+00> : vector<16x8x16xf32>
    %33 = tpu.matmul %31, %32, %cst_24 {dimension_numbers = #tpu.dot_dimension_numbers<[2], [1], [1], [2], [0, 0, 0, 1, 1, 2], [0], [0]>} : vector<16x8x16xf32>, vector<16x16x16xf32>, vector<16x8x16xf32> -> vector<16x8x16xf32>
    %34 = vector.shape_cast %33 : vector<16x8x16xf32> to vector<16x128xf32>
    %35 = arith.index_cast %c0_i32 : i32 to index
    %c0_25 = arith.constant 0 : index
    %c0_26 = arith.constant 0 : index
    %36 = vector.load %arg11[%35, %c0_25, %c0_26] : memref<1x16x128xf32, #tpu.memory_space<vmem>>, vector<1x16x128xf32>
    %37 = vector.shape_cast %36 : vector<1x16x128xf32> to vector<16x128xf32>
    %38 = vector.shape_cast %34 : vector<16x128xf32> to vector<1x16x128xf32>
    tpu.vector_store %arg11[%35, %c0_25, %c0_26], %38 {strides = array<i32>} : memref<1x16x128xf32, #tpu.memory_space<vmem>>, vector<1x16x128xf32>,
    %c1_i32 = arith.constant 1 : i32
    return
  }
  func.func @transform_0(%arg0: i32) -> (i32, i32, i32) {
    %c0_i32 = arith.constant 0 : i32
    %c0_i32_0 = arith.constant 0 : i32
    %c0_i32_1 = arith.constant 0 : i32
    return %arg0, %c0_i32, %c0_i32_0 : i32, i32, i32
  }
  func.func @transform_1(%arg0: i32) -> (i32, i32) {
    %c0_i32 = arith.constant 0 : i32
    %c0_i32_0 = arith.constant 0 : i32
    %c0_i32_1 = arith.constant 0 : i32
    return %c0_i32, %c0_i32_0 : i32, i32
  }
  func.func @transform_2(%arg0: i32) -> (i32, i32) {
    %c0_i32 = arith.constant 0 : i32
    %c0_i32_0 = arith.constant 0 : i32
    %c0_i32_1 = arith.constant 0 : i32
    return %c0_i32, %c0_i32_0 : i32, i32
  }
  func.func @transform_3(%arg0: i32) -> (i32, i32) {
    %c0_i32 = arith.constant 0 : i32
    %c0_i32_0 = arith.constant 0 : i32
    %c0_i32_1 = arith.constant 0 : i32
    return %c0_i32, %c0_i32_0 : i32, i32
  }
  func.func @transform_4(%arg0: i32) -> (i32, i32) {
    %c0_i32 = arith.constant 0 : i32
    %c0_i32_0 = arith.constant 0 : i32
    %c0_i32_1 = arith.constant 0 : i32
    return %c0_i32, %c0_i32_0 : i32, i32
  }
  func.func @transform_5(%arg0: i32) -> (i32, i32) {
    %c0_i32 = arith.constant 0 : i32
    %c0_i32_0 = arith.constant 0 : i32
    %c0_i32_1 = arith.constant 0 : i32
    return %c0_i32, %c0_i32_0 : i32, i32
  }
  func.func @transform_6(%arg0: i32) -> (i32, i32) {
    %c0_i32 = arith.constant 0 : i32
    %c0_i32_0 = arith.constant 0 : i32
    %c0_i32_1 = arith.constant 0 : i32
    return %c0_i32, %c0_i32_0 : i32, i32
  }
  func.func @transform_7(%arg0: i32) -> (i32, i32) {
    %c0_i32 = arith.constant 0 : i32
    %c0_i32_0 = arith.constant 0 : i32
    %c0_i32_1 = arith.constant 0 : i32
    return %c0_i32, %c0_i32_0 : i32, i32
  }
  func.func @transform_8(%arg0: i32) -> (i32, i32) {
    %c0_i32 = arith.constant 0 : i32
    %c0_i32_0 = arith.constant 0 : i32
    %c0_i32_1 = arith.constant 0 : i32
    return %c0_i32, %c0_i32_0 : i32, i32
  }
  func.func @transform_9(%arg0: i32) -> (i32, i32) {
    %c0_i32 = arith.constant 0 : i32
    %c0_i32_0 = arith.constant 0 : i32
    %c0_i32_1 = arith.constant 0 : i32
    return %c0_i32, %c0_i32_0 : i32, i32
  }
  func.func @transform_10(%arg0: i32) -> (i32, i32, i32) {
    %c0_i32 = arith.constant 0 : i32
    %c0_i32_0 = arith.constant 0 : i32
    %c0_i32_1 = arith.constant 0 : i32
    return %arg0, %c0_i32, %c0_i32_0 : i32, i32, i32
  }
}

</mosaic_0001>

<llo_original>
// kernel: tpu_custom_call.1
$region0: #{tpu_custom_call.1}
  #allocation0 [shape = 'u32[]', space=smem, size = 0x4, offset = 0x4, fixed_abs, tag = 'smem constant byte address 0x4 - core index']
  #allocation1 [shape = 'u32[144,128]{1,0:T(1,128)}', space=vmem, size = 0x12000, scoped, tag = 'internal scratch']
  %s0 = inlined_call_operand.vmem [shape: f32[2,3,128], index: 0, kind: input, shape index: {}]
  %s1 = inlined_call_operand.vmem [shape: f32[16,3], index: 1, kind: input, shape index: {}]
  %s2 = inlined_call_operand.vmem [shape: f32[16,1], index: 2, kind: input, shape index: {}]
  %s3 = inlined_call_operand.vmem [shape: f32[16,3], index: 3, kind: input, shape index: {}]
  %s4 = inlined_call_operand.vmem [shape: f32[16,1], index: 4, kind: input, shape index: {}]
  %s5 = inlined_call_operand.vmem [shape: f32[16,8], index: 5, kind: input, shape index: {}]
  %s6 = inlined_call_operand.vmem [shape: f32[16,1], index: 6, kind: input, shape index: {}]
  %s7 = inlined_call_operand.vmem [shape: f32[128,16], index: 7, kind: input, shape index: {}]
  %s8 = inlined_call_operand.vmem [shape: f32[32,256], index: 8, kind: input, shape index: {}]
  %s9 = inlined_call_operand.vmem [shape: f32[1,256], index: 9, kind: input, shape index: {}]
  %s10 = inlined_call_operand.hbm [shape: f32[2,16,128], index: 10, kind: output, shape index: {}]
  %s11 = sld [smem:[#allocation0]]
  $region73: #{tpu_custom_call.1} parent=0
    _
  %s13 = ssub.s32 1, %s11
  %s14 = scalar_select 0, %s13, %s11
  $region1: #{tpu_custom_call.1} parent=0
    #allocation2 [shape = 'u8[16384]{0}', space=vmem, size = 0x4000, scoped, tag = 'output window, operand 0']
    #allocation3 [shape = 's32[2]{0}', space=sflag, size = 0x8, scoped, tag = 'scoped memory for tpu_custom_call.1']
    %15 = vsyncpa [#allocation3], 0
    %s16 = scalar_lea.sflag [#allocation3], 1
    %17 = vsyncpa %s16, 0
    loop: start=0, step=1, limit=4
    $region2: #{tpu_custom_call.1} parent=1 // loop_pre_header
      _
    $region3: #{tpu_custom_call.1} parent=1 // loop_header
      %s19 = sphi 0, %s23
      %p20 = scmp.ge.s32.totalorder %s19, 4
      %s29 = sphi 0, %s31
      %s32 = sphi 0, %s29
      %s33 = sphi 0, %s32
      %s49 = sphi 0, %s33
      %s53 = sphi 0, %s53
      %s55 = sphi 0, %s53
      %s56 = sphi 0, %s55
      %s70 = sphi 0, %s56
      %s74 = sphi 0, %s74
      %s76 = sphi 0, %s74
      %s77 = sphi 0, %s76
      %s91 = sphi 0, %s77
      %s95 = sphi 0, %s95
      %s97 = sphi 0, %s95
      %s98 = sphi 0, %s97
      %s112 = sphi 0, %s98
      %s116 = sphi 0, %s116
      %s118 = sphi 0, %s116
      %s119 = sphi 0, %s118
      %s133 = sphi 0, %s119
      %s137 = sphi 0, %s137
      %s139 = sphi 0, %s137
      %s140 = sphi 0, %s139
      %s154 = sphi 0, %s140
      %s158 = sphi 0, %s158
      %s160 = sphi 0, %s158
      %s161 = sphi 0, %s160
      %s175 = sphi 0, %s161
      %s179 = sphi 0, %s179
      %s181 = sphi 0, %s179
      %s182 = sphi 0, %s181
      %s196 = sphi 0, %s182
      %s200 = sphi 0, %s200
      %s202 = sphi 0, %s200
      %s203 = sphi 0, %s202
      %s217 = sphi 0, %s203
      %s221 = sphi 0, %s221
      %s223 = sphi 0, %s221
      %s224 = sphi 0, %s223
      %s238 = sphi 0, %s224
      %s244 = sphi 0, %s246
      %s247 = sphi 0, %s244
      %s248 = sphi 0, %s247
      %s264 = sphi 0, %s248
    $region4: #{tpu_custom_call.1} parent=1 // loop_header_branch
      %22 = sbr.rel (%p20) target = $region8
    $region5: #{tpu_custom_call.1} parent=1 // loop_body
      %s24 = ssub.s32 %s19, 1
      %s25 = ssub.s32 %s19, 2
      %s26 = sadd.s32 %s19, 1
      %s27 = ssub.s32 %s19, %s26
      %p28 = scmp.eq.s32.totalorder %s27, 0
      %s30 = sadd.s32 %s29, 1
      %s31 = scalar_select %p28, %s29, %s30
      %p34 = pneg %p28
      %p35 = scmp.eq.s32.totalorder %s19, 1
      %p36 = por %p34, %p35
      %p37 = scmp.ne.s32.totalorder %s29, %s32
      %p38 = scmp.eq.s32.totalorder %s19, 0
      %p39 = por %p37, %p38
      %p40 = scmp.ne.s32.totalorder %s29, %s32
      %p41 = scmp.eq.s32.totalorder %s24, 1
      %p42 = por %p40, %p41
      %p43 = scmp.ne.s32.totalorder %s32, %s33
      %p44 = scmp.eq.s32.totalorder %s24, 0
      %p45 = por %p43, %p44
      %p46 = scmp.ne.s32.totalorder %s32, %s33
      %p47 = scmp.eq.s32.totalorder %s25, 1
      %p48 = por %p46, %p47
      %p50 = scmp.ne.s32.totalorder %s33, %s49
      %p51 = scmp.eq.s32.totalorder %s25, 0
      %p52 = por %p50, %p51
      %s54 = sadd.s32 %s53, 1
      %p57 = scmp.eq.s32.totalorder %s19, 1
      %p58 = scmp.ne.s32.totalorder %s53, %s55
      %p59 = scmp.eq.s32.totalorder %s19, 0
      %p60 = por %p58, %p59
      %p61 = scmp.ne.s32.totalorder %s53, %s55
      %p62 = scmp.eq.s32.totalorder %s24, 1
      %p63 = por %p61, %p62
      %p64 = scmp.ne.s32.totalorder %s55, %s56
      %p65 = scmp.eq.s32.totalorder %s24, 0
      %p66 = por %p64, %p65
      %p67 = scmp.ne.s32.totalorder %s55, %s56
      %p68 = scmp.eq.s32.totalorder %s25, 1
      %p69 = por %p67, %p68
      %p71 = scmp.ne.s32.totalorder %s56, %s70
      %p72 = scmp.eq.s32.totalorder %s25, 0
      %p73 = por %p71, %p72
      %s75 = sadd.s32 %s74, 1
      %p78 = scmp.eq.s32.totalorder %s19, 1
      %p79 = scmp.ne.s32.totalorder %s74, %s76
      %p80 = scmp.eq.s32.totalorder %s19, 0
      %p81 = por %p79, %p80
      %p82 = scmp.ne.s32.totalorder %s74, %s76
      %p83 = scmp.eq.s32.totalorder %s24, 1
      %p84 = por %p82, %p83
      %p85 = scmp.ne.s32.totalorder %s76, %s77
      %p86 = scmp.eq.s32.totalorder %s24, 0
      %p87 = por %p85, %p86
      %p88 = scmp.ne.s32.totalorder %s76, %s77
      %p89 = scmp.eq.s32.totalorder %s25, 1
      %p90 = por %p88, %p89
      %p92 = scmp.ne.s32.totalorder %s77, %s91
      %p93 = scmp.eq.s32.totalorder %s25, 0
      %p94 = por %p92, %p93
      %s96 = sadd.s32 %s95, 1
      %p99 = scmp.eq.s32.totalorder %s19, 1
      %p100 = scmp.ne.s32.totalorder %s95, %s97
      %p101 = scmp.eq.s32.totalorder %s19, 0
      %p102 = por %p100, %p101
      %p103 = scmp.ne.s32.totalorder %s95, %s97
      %p104 = scmp.eq.s32.totalorder %s24, 1
      %p105 = por %p103, %p104
      %p106 = scmp.ne.s32.totalorder %s97, %s98
      %p107 = scmp.eq.s32.totalorder %s24, 0
      %p108 = por %p106, %p107
      %p109 = scmp.ne.s32.totalorder %s97, %s98
      %p110 = scmp.eq.s32.totalorder %s25, 1
      %p111 = por %p109, %p110
      %p113 = scmp.ne.s32.totalorder %s98, %s112
      %p114 = scmp.eq.s32.totalorder %s25, 0
      %p115 = por %p113, %p114
      %s117 = sadd.s32 %s116, 1
      %p120 = scmp.eq.s32.totalorder %s19, 1
      %p121 = scmp.ne.s32.totalorder %s116, %s118
      %p122 = scmp.eq.s32.totalorder %s19, 0
      %p123 = por %p121, %p122
      %p124 = scmp.ne.s32.totalorder %s116, %s118
      %p125 = scmp.eq.s32.totalorder %s24, 1
      %p126 = por %p124, %p125
      %p127 = scmp.ne.s32.totalorder %s118, %s119
      %p128 = scmp.eq.s32.totalorder %s24, 0
      %p129 = por %p127, %p128
      %p130 = scmp.ne.s32.totalorder %s118, %s119
      %p131 = scmp.eq.s32.totalorder %s25, 1
      %p132 = por %p130, %p131
      %p134 = scmp.ne.s32.totalorder %s119, %s133
      %p135 = scmp.eq.s32.totalorder %s25, 0
      %p136 = por %p134, %p135
      %s138 = sadd.s32 %s137, 1
      %p141 = scmp.eq.s32.totalorder %s19, 1
      %p142 = scmp.ne.s32.totalorder %s137, %s139
      %p143 = scmp.eq.s32.totalorder %s19, 0
      %p144 = por %p142, %p143
      %p145 = scmp.ne.s32.totalorder %s137, %s139
      %p146 = scmp.eq.s32.totalorder %s24, 1
      %p147 = por %p145, %p146
      %p148 = scmp.ne.s32.totalorder %s139, %s140
      %p149 = scmp.eq.s32.totalorder %s24, 0
      %p150 = por %p148, %p149
      %p151 = scmp.ne.s32.totalorder %s139, %s140
      %p152 = scmp.eq.s32.totalorder %s25, 1
      %p153 = por %p151, %p152
      %p155 = scmp.ne.s32.totalorder %s140, %s154
      %p156 = scmp.eq.s32.totalorder %s25, 0
      %p157 = por %p155, %p156
      %s159 = sadd.s32 %s158, 1
      %p162 = scmp.eq.s32.totalorder %s19, 1
      %p163 = scmp.ne.s32.totalorder %s158, %s160
      %p164 = scmp.eq.s32.totalorder %s19, 0
      %p165 = por %p163, %p164
      %p166 = scmp.ne.s32.totalorder %s158, %s160
      %p167 = scmp.eq.s32.totalorder %s24, 1
      %p168 = por %p166, %p167
      %p169 = scmp.ne.s32.totalorder %s160, %s161
      %p170 = scmp.eq.s32.totalorder %s24, 0
      %p171 = por %p169, %p170
      %p172 = scmp.ne.s32.totalorder %s160, %s161
      %p173 = scmp.eq.s32.totalorder %s25, 1
      %p174 = por %p172, %p173
      %p176 = scmp.ne.s32.totalorder %s161, %s175
      %p177 = scmp.eq.s32.totalorder %s25, 0
      %p178 = por %p176, %p177
      %s180 = sadd.s32 %s179, 1
      %p183 = scmp.eq.s32.totalorder %s19, 1
      %p184 = scmp.ne.s32.totalorder %s179, %s181
      %p185 = scmp.eq.s32.totalorder %s19, 0
      %p186 = por %p184, %p185
      %p187 = scmp.ne.s32.totalorder %s179, %s181
      %p188 = scmp.eq.s32.totalorder %s24, 1
      %p189 = por %p187, %p188
      %p190 = scmp.ne.s32.totalorder %s181, %s182
      %p191 = scmp.eq.s32.totalorder %s24, 0
      %p192 = por %p190, %p191
      %p193 = scmp.ne.s32.totalorder %s181, %s182
      %p194 = scmp.eq.s32.totalorder %s25, 1
      %p195 = por %p193, %p194
      %p197 = scmp.ne.s32.totalorder %s182, %s196
      %p198 = scmp.eq.s32.totalorder %s25, 0
      %p199 = por %p197, %p198
      %s201 = sadd.s32 %s200, 1
      %p204 = scmp.eq.s32.totalorder %s19, 1
      %p205 = scmp.ne.s32.totalorder %s200, %s202
      %p206 = scmp.eq.s32.totalorder %s19, 0
      %p207 = por %p205, %p206
      %p208 = scmp.ne.s32.totalorder %s200, %s202
      %p209 = scmp.eq.s32.totalorder %s24, 1
      %p210 = por %p208, %p209
      %p211 = scmp.ne.s32.totalorder %s202, %s203
      %p212 = scmp.eq.s32.totalorder %s24, 0
      %p213 = por %p211, %p212
      %p214 = scmp.ne.s32.totalorder %s202, %s203
      %p215 = scmp.eq.s32.totalorder %s25, 1
      %p216 = por %p214, %p215
      %p218 = scmp.ne.s32.totalorder %s203, %s217
      %p219 = scmp.eq.s32.totalorder %s25, 0
      %p220 = por %p218, %p219
      %s222 = sadd.s32 %s221, 1
      %p225 = scmp.eq.s32.totalorder %s19, 1
      %p226 = scmp.ne.s32.totalorder %s221, %s223
      %p227 = scmp.eq.s32.totalorder %s19, 0
      %p228 = por %p226, %p227
      %p229 = scmp.ne.s32.totalorder %s221, %s223
      %p230 = scmp.eq.s32.totalorder %s24, 1
      %p231 = por %p229, %p230
      %p232 = scmp.ne.s32.totalorder %s223, %s224
      %p233 = scmp.eq.s32.totalorder %s24, 0
      %p234 = por %p232, %p233
      %p235 = scmp.ne.s32.totalorder %s223, %s224
      %p236 = scmp.eq.s32.totalorder %s25, 1
      %p237 = por %p235, %p236
      %p239 = scmp.ne.s32.totalorder %s224, %s238
      %p240 = scmp.eq.s32.totalorder %s25, 0
      %p241 = por %p239, %p240
      %s242 = ssub.s32 %s19, %s26
      %p243 = scmp.eq.s32.totalorder %s242, 0
      %s245 = sadd.s32 %s244, 1
      %s246 = scalar_select %p243, %s244, %s245
      %p249 = pneg %p243
      %p250 = scmp.eq.s32.totalorder %s19, 1
      %p251 = por %p249, %p250
      %p252 = scmp.ne.s32.totalorder %s244, %s247
      %p253 = scmp.eq.s32.totalorder %s19, 0
      %p254 = por %p252, %p253
      %p255 = scmp.ne.s32.totalorder %s244, %s247
      %p256 = scmp.eq.s32.totalorder %s24, 1
      %p257 = por %p255, %p256
      %p258 = scmp.ne.s32.totalorder %s247, %s248
      %p259 = scmp.eq.s32.totalorder %s24, 0
      %p260 = por %p258, %p259
      %p261 = scmp.ne.s32.totalorder %s247, %s248
      %p262 = scmp.eq.s32.totalorder %s25, 1
      %p263 = por %p261, %p262
      %p265 = scmp.ne.s32.totalorder %s248, %s264
      %p266 = scmp.eq.s32.totalorder %s25, 0
      %p267 = por %p265, %p266
      %p268 = scmp.le.s32.totalorder 1, %s19
      %p269 = scmp.lt.s32.totalorder %s19, 3
      %p270 = pnand %p268, %p269
      %p271 = pneg %p270
      // Predicated region
      $region9: #{tpu_custom_call.1} parent=5 // pred_check
        _
      $region10: #{tpu_custom_call.1} parent=5 // pred_check_branch
        %273 = sbr.rel (%p270) target = $region12
      $region11: #{tpu_custom_call.1} parent=5 // pred_region
        %s274 = ssub.s32 %s19, 1
        // Predicated region
        $region13: #{tpu_custom_call.1} parent=11 // pred_check
          %p275 = pneg %p66
        $region14: #{tpu_custom_call.1} parent=11 // pred_check_branch
          %277 = sbr.rel (%p275) target = $region16
        $region15: #{tpu_custom_call.1} parent=11 // pred_region
          _
        $region16: #{tpu_custom_call.1} parent=11 // pred_fallthru
          _
        // Predicated region
        $region17: #{tpu_custom_call.1} parent=11 // pred_check
          %p278 = pneg %p87
        $region18: #{tpu_custom_call.1} parent=11 // pred_check_branch
          %280 = sbr.rel (%p278) target = $region20
        $region19: #{tpu_custom_call.1} parent=11 // pred_region
          _
        $region20: #{tpu_custom_call.1} parent=11 // pred_fallthru
          _
        // Predicated region
        $region21: #{tpu_custom_call.1} parent=11 // pred_check
          %p281 = pneg %p108
        $region22: #{tpu_custom_call.1} parent=11 // pred_check_branch
          %283 = sbr.rel (%p281) target = $region24
        $region23: #{tpu_custom_call.1} parent=11 // pred_region
          _
        $region24: #{tpu_custom_call.1} parent=11 // pred_fallthru
          _
        // Predicated region
        $region25: #{tpu_custom_call.1} parent=11 // pred_check
          %p284 = pneg %p129
        $region26: #{tpu_custom_call.1} parent=11 // pred_check_branch
          %286 = sbr.rel (%p284) target = $region28
        $region27: #{tpu_custom_call.1} parent=11 // pred_region
          _
        $region28: #{tpu_custom_call.1} parent=11 // pred_fallthru
          _
        // Predicated region
        $region29: #{tpu_custom_call.1} parent=11 // pred_check
          %p287 = pneg %p150
        $region30: #{tpu_custom_call.1} parent=11 // pred_check_branch
          %289 = sbr.rel (%p287) target = $region32
        $region31: #{tpu_custom_call.1} parent=11 // pred_region
          _
        $region32: #{tpu_custom_call.1} parent=11 // pred_fallthru
          _
        // Predicated region
        $region33: #{tpu_custom_call.1} parent=11 // pred_check
          %p290 = pneg %p171
        $region34: #{tpu_custom_call.1} parent=11 // pred_check_branch
          %292 = sbr.rel (%p290) target = $region36
        $region35: #{tpu_custom_call.1} parent=11 // pred_region
          _
        $region36: #{tpu_custom_call.1} parent=11 // pred_fallthru
          _
        // Predicated region
        $region37: #{tpu_custom_call.1} parent=11 // pred_check
          %p293 = pneg %p192
        $region38: #{tpu_custom_call.1} parent=11 // pred_check_branch
          %295 = sbr.rel (%p293) target = $region40
        $region39: #{tpu_custom_call.1} parent=11 // pred_region
          _
        $region40: #{tpu_custom_call.1} parent=11 // pred_fallthru
          _
        // Predicated region
        $region41: #{tpu_custom_call.1} parent=11 // pred_check
          %p296 = pneg %p213
        $region42: #{tpu_custom_call.1} parent=11 // pred_check_branch
          %298 = sbr.rel (%p296) target = $region44
        $region43: #{tpu_custom_call.1} parent=11 // pred_region
          _
        $region44: #{tpu_custom_call.1} parent=11 // pred_fallthru
          _
        // Predicated region
        $region45: #{tpu_custom_call.1} parent=11 // pred_check
          %p299 = pneg %p234
        $region46: #{tpu_custom_call.1} parent=11 // pred_check_branch
          %301 = sbr.rel (%p299) target = $region48
        $region47: #{tpu_custom_call.1} parent=11 // pred_region
          _
        $region48: #{tpu_custom_call.1} parent=11 // pred_fallthru
          _
      $region12: #{tpu_custom_call.1} parent=5 // pred_fallthru
        _
      %p302 = scmp.lt.s32.totalorder %s19, 2
      // Predicated region
      $region49: #{tpu_custom_call.1} parent=5 // pred_check
        %p303 = pneg %p302
      $region50: #{tpu_custom_call.1} parent=5 // pred_check_branch
        %305 = sbr.rel (%p303) target = $region52
      $region51: #{tpu_custom_call.1} parent=5 // pred_region
        // Predicated region
        $region53: #{tpu_custom_call.1} parent=51 // pred_check
          %p306 = pneg %p39
        $region54: #{tpu_custom_call.1} parent=51 // pred_check_branch
          %308 = sbr.rel (%p306) target = $region56
        $region55: #{tpu_custom_call.1} parent=51 // pred_region
          %p309 = scmp.lt.s32.totalorder %s19, 1
          %s310 = scalar_select %p309, %s19, 1
          %s311 = smul.addr %s310, 4
          %s312 = scalar_lea.vmem %s0, %s311
        $region56: #{tpu_custom_call.1} parent=51 // pred_fallthru
          _
      $region52: #{tpu_custom_call.1} parent=5 // pred_fallthru
        _
      %p313 = scmp.le.s32.totalorder 1, %s19
      %p314 = scmp.lt.s32.totalorder %s19, 3
      %p315 = pnand %p313, %p314
      %p316 = pneg %p315
      // Predicated region
      $region57: #{tpu_custom_call.1} parent=5 // pred_check
        _
      $region58: #{tpu_custom_call.1} parent=5 // pred_check_branch
        %318 = sbr.rel (%p315) target = $region60
      $region59: #{tpu_custom_call.1} parent=5 // pred_region
        %s319 = ssub.s32 %s19, 1
        %p320 = scmp.lt.s32.totalorder %s24, 1
        %s321 = scalar_select %p320, %s24, 1
        %s322 = smul.addr %s321, 4
        %s323 = scalar_lea.vmem %s0, %s322
        %p324 = pneg %p45
        %p325 = pneg %p42
        %p326 = pneg %p66
        %p327 = pneg %p63
        %p328 = pneg %p87
        %p329 = pneg %p84
        %p330 = pneg %p108
        %p331 = pneg %p105
        %p332 = pneg %p129
        %p333 = pneg %p126
        %p334 = pneg %p150
        %p335 = pneg %p147
        %p336 = pneg %p171
        %p337 = pneg %p168
        %p338 = pneg %p192
        %p339 = pneg %p189
        %p340 = pneg %p213
        %p341 = pneg %p210
        %p342 = pneg %p234
        %p343 = pneg %p231
        %p344 = pneg %p260
        %p345 = pneg %p257
        %s346 = sand.u32 %s247, 1
        %s347 = scalar_lea.sflag [#allocation3], %s346
        %s348 = sand.u32 %s247, 1
        %s349 = smul.addr %s348, 16
        %s350 = scalar_lea.vmem [#allocation2], %s349
        %p351 = scmp.lt.s32.totalorder %s24, 1
        %s352 = scalar_select %p351, %s24, 1
        %s353 = smul.addr %s352, 4
        %s354 = scalar_lea.vmem %s0, %s353
        %v355 = vld [vmem:[%s1] sm:$0xff]
        %v356 = vld [vmem:[%s1 + $0x8] sm:$0xff]
        %v357 = vld [vmem:[%s2] sm:$0xff]
        %v358 = vld [vmem:[%s2 + $0x8] sm:$0xff]
        %v359 = vld [vmem:[%s3] sm:$0xff]
        %v360 = vld [vmem:[%s3 + $0x8] sm:$0xff]
        %v361 = vld [vmem:[%s4] sm:$0xff]
        %v362 = vld [vmem:[%s4 + $0x8] sm:$0xff]
        %v363 = vld [vmem:[%s5] sm:$0xff]
        %v364 = vld [vmem:[%s5 + $0x8] sm:$0xff]
        %v365 = vld [vmem:[%s6] sm:$0xff]
        %v366 = vld [vmem:[%s6 + $0x8] sm:$0xff]
        %v367 = vld [vmem:[%s7] sm:$0xff]
        %v368 = vld [vmem:[%s7 + $0x8] sm:$0xff]
        %v369 = vld [vmem:[%s7 + $0x10] sm:$0xff]
        %v370 = vld [vmem:[%s7 + $0x18] sm:$0xff]
        %v371 = vld [vmem:[%s7 + $0x20] sm:$0xff]
        %v372 = vld [vmem:[%s7 + $0x28] sm:$0xff]
        %v373 = vld [vmem:[%s7 + $0x30] sm:$0xff]
        %v374 = vld [vmem:[%s7 + $0x38] sm:$0xff]
        %v375 = vld [vmem:[%s7 + $0x40] sm:$0xff]
        %v376 = vld [vmem:[%s7 + $0x48] sm:$0xff]
        %v377 = vld [vmem:[%s7 + $0x50] sm:$0xff]
        %v378 = vld [vmem:[%s7 + $0x58] sm:$0xff]
        %v379 = vld [vmem:[%s7 + $0x60] sm:$0xff]
        %v380 = vld [vmem:[%s7 + $0x68] sm:$0xff]
        %v381 = vld [vmem:[%s7 + $0x70] sm:$0xff]
        %v382 = vld [vmem:[%s7 + $0x78] sm:$0xff]
        %v383 = vld [vmem:[%s8] sm:$0xff]
        %v384 = vld [vmem:[%s8 + $0x8] sm:$0xff]
        %v385 = vld [vmem:[%s8 + $0x10] sm:$0xff]
        %v386 = vld [vmem:[%s8 + $0x18] sm:$0xff]
        %v387 = vld [vmem:[%s8 + $0x20] sm:$0xff]
        %v388 = vld [vmem:[%s8 + $0x28] sm:$0xff]
        %v389 = vld [vmem:[%s8 + $0x30] sm:$0xff]
        %v390 = vld [vmem:[%s8 + $0x38] sm:$0xff]
        %v391 = vld [vmem:[%s9] sm:$0x3]
        %v392 = vld [vmem:[%s354] sm:$0x7]
        %393 = vmatprep.subr.mxu0 0.0
        %394 = vmatpush1.msra.mxu0 %v367
        %395 = vmatprep.subr.mxu0 0.0
        %396 = vmatpush1.msra.mxu0 %v368
        %397 = vmatprep.subr.mxu0 0.0
        %398 = vmatpush1.msra.mxu0 %v369
        %399 = vmatprep.subr.mxu0 0.0
        %400 = vmatpush1.msra.mxu0 %v370
        %401 = vmatprep.subr.mxu0 0.0
        %402 = vmatpush1.msra.mxu0 %v371
        %403 = vmatprep.subr.mxu0 0.0
        %404 = vmatpush1.msra.mxu0 %v372
        %405 = vmatprep.subr.mxu0 0.0
        %406 = vmatpush1.msra.mxu0 %v373
        %407 = vmatprep.subr.mxu0 0.0
        %408 = vmatpush1.msra.mxu0 %v374
        %409 = vmatprep.subr.mxu0 0.0
        %410 = vmatpush1.msra.mxu0 %v375
        %411 = vmatprep.subr.mxu0 0.0
        %412 = vmatpush1.msra.mxu0 %v376
        %413 = vmatprep.subr.mxu0 0.0
        %414 = vmatpush1.msra.mxu0 %v377
        %415 = vmatprep.subr.mxu0 0.0
        %416 = vmatpush1.msra.mxu0 %v378
        %417 = vmatprep.subr.mxu0 0.0
        %418 = vmatpush1.msra.mxu0 %v379
        %419 = vmatprep.subr.mxu0 0.0
        %420 = vmatpush1.msra.mxu0 %v380
        %421 = vmatprep.subr.mxu0 0.0
        %422 = vmatpush1.msra.mxu0 %v381
        %423 = vmatprep.subr.mxu0 0.0
        %424 = vmatpush1.msra.mxu0 %v382
        %425 = vmatprep.subr.mxu0 0.0
        %426 = vmatpush1.msra.mxu0 0.0
        %427 = vmatprep.subr.mxu0 0.0
        %428 = vmatpush1.msra.mxu0 0.0
        %429 = vmatprep.subr.mxu0 0.0
        %430 = vmatpush1.msra.mxu0 0.0
        %431 = vmatprep.subr.mxu0 0.0
        %432 = vmatpush1.msra.mxu0 0.0
        %433 = vmatprep.subr.mxu0 0.0
        %434 = vmatpush1.msra.mxu0 0.0
        %435 = vmatprep.subr.mxu0 0.0
        %436 = vmatpush1.msra.mxu0 0.0
        %437 = vmatprep.subr.mxu0 0.0
        %438 = vmatpush1.msra.mxu0 0.0
        %439 = vmatprep.subr.mxu0 0.0
        %440 = vmatpush1.msra.mxu0 0.0
        %441 = vmatprep.subr.mxu0 0.0
        %442 = vmatpush1.msra.mxu0 0.0
        %443 = vmatprep.subr.mxu0 0.0
        %444 = vmatpush1.msra.mxu0 0.0
        %445 = vmatprep.subr.mxu0 0.0
        %446 = vmatpush1.msra.mxu0 0.0
        %447 = vmatprep.subr.mxu0 0.0
        %448 = vmatpush1.msra.mxu0 0.0
        %449 = vmatprep.subr.mxu0 0.0
        %450 = vmatpush1.msra.mxu0 0.0
        %451 = vmatprep.subr.mxu0 0.0
        %452 = vmatpush1.msra.mxu0 0.0
        %453 = vmatprep.subr.mxu0 0.0
        %454 = vmatpush1.msra.mxu0 0.0
        %455 = vmatprep.subr.mxu0 0.0
        %456 = vmatpush1.msra.mxu0 0.0
        %457 = vmatprep.mubr.f32.mxu0 0.0
        %458 = vmatmul.mubr.f32.gmra.mrb[0].mxu0 %v392
        %v459 = vpop.f32.mrb[0].mxu0
        %v460 = vadd.f32 0.0, %v459
        %v461 = vpop.f32.mrb[0].mxu0
        %462 = vdwg.mxu0
        %464 = vset.pattern.permute.xlu0 0
        %465 = vperm.xlu0 %464, %v357
        %v466 = vpop.permute.xlu0 %465
        %469 = vset.pattern.permute.xlu0 0
        %470 = vperm.xlu0 %469, %v358
        %v471 = vpop.permute.xlu0 %470
        %vm473 = vcmask 23552
        %v475 = vsel %vm473, %v355, 0
        %v478 = vsel %vm473, %v356, 0
        %vm480 = vcmask 1042432
        %v482 = vsel %vm480, %v460, 0
        %484 = vmatprep.subr.mxu0 0.0
        %485 = vmatpush1.msra.mxu0 %v482
        %486 = vmatprep.subr.mxu0 0.0
        %487 = vmatpush1.msra.mxu0 0.0
        %488 = vmatprep.subr.mxu0 0.0
        %489 = vmatpush1.msra.mxu0 0.0
        %490 = vmatprep.subr.mxu0 0.0
        %491 = vmatpush1.msra.mxu0 0.0
        %492 = vmatprep.subr.mxu0 0.0
        %493 = vmatpush1.msra.mxu0 0.0
        %494 = vmatprep.subr.mxu0 0.0
        %495 = vmatpush1.msra.mxu0 0.0
        %496 = vmatprep.subr.mxu0 0.0
        %497 = vmatpush1.msra.mxu0 0.0
        %498 = vmatprep.subr.mxu0 0.0
        %499 = vmatpush1.msra.mxu0 0.0
        %500 = vmatprep.subr.mxu0 0.0
        %501 = vmatpush1.msra.mxu0 0.0
        %502 = vmatprep.subr.mxu0 0.0
        %503 = vmatpush1.msra.mxu0 0.0
        %504 = vmatprep.subr.mxu0 0.0
        %505 = vmatpush1.msra.mxu0 0.0
        %506 = vmatprep.subr.mxu0 0.0
        %507 = vmatpush1.msra.mxu0 0.0
        %508 = vmatprep.subr.mxu0 0.0
        %509 = vmatpush1.msra.mxu0 0.0
        %510 = vmatprep.subr.mxu0 0.0
        %511 = vmatpush1.msra.mxu0 0.0
        %512 = vmatprep.subr.mxu0 0.0
        %513 = vmatpush1.msra.mxu0 0.0
        %514 = vmatprep.subr.mxu0 0.0
        %515 = vmatpush1.msra.mxu0 0.0
        %516 = vmatprep.subr.mxu0 0.0
        %517 = vmatpush1.msra.mxu0 0.0
        %518 = vmatprep.subr.mxu0 0.0
        %519 = vmatpush1.msra.mxu0 0.0
        %520 = vmatprep.subr.mxu0 0.0
        %521 = vmatpush1.msra.mxu0 0.0
        %522 = vmatprep.subr.mxu0 0.0
        %523 = vmatpush1.msra.mxu0 0.0
        %524 = vmatprep.subr.mxu0 0.0
        %525 = vmatpush1.msra.mxu0 0.0
        %526 = vmatprep.subr.mxu0 0.0
        %527 = vmatpush1.msra.mxu0 0.0
        %528 = vmatprep.subr.mxu0 0.0
        %529 = vmatpush1.msra.mxu0 0.0
        %530 = vmatprep.subr.mxu0 0.0
        %531 = vmatpush1.msra.mxu0 0.0
        %532 = vmatprep.subr.mxu0 0.0
        %533 = vmatpush1.msra.mxu0 0.0
        %534 = vmatprep.subr.mxu0 0.0
        %535 = vmatpush1.msra.mxu0 0.0
        %536 = vmatprep.subr.mxu0 0.0
        %537 = vmatpush1.msra.mxu0 0.0
        %538 = vmatprep.subr.mxu0 0.0
        %539 = vmatpush1.msra.mxu0 0.0
        %540 = vmatprep.subr.mxu0 0.0
        %541 = vmatpush1.msra.mxu0 0.0
        %542 = vmatprep.subr.mxu0 0.0
        %543 = vmatpush1.msra.mxu0 0.0
        %544 = vmatprep.subr.mxu0 0.0
        %545 = vmatpush1.msra.mxu0 0.0
        %546 = vmatprep.subr.mxu0 0.0
        %547 = vmatpush1.msra.mxu0 0.0
        %548 = vmatprep.mubr.f32.mxu0 0.0
        %549 = vmatmul.mubr.f32.gmra.mrb[0].mxu0 %v475
        %v550 = vpop.f32.mrb[0].mxu0
        %v551 = vadd.f32 %v466, %v550
        %v552 = vpop.f32.mrb[0].mxu0
        %553 = vmatprep.mubr.f32.mxu0 0.0
        %554 = vmatmul.mubr.f32.gmra.mrb[0].mxu0 %v478
        %v555 = vpop.f32.mrb[0].mxu0
        %v556 = vadd.f32 %v471, %v555
        %v557 = vpop.f32.mrb[0].mxu0
        %558 = vdwg.mxu0
        %560 = vrot.lane.b32.xlu0 %v556, 16
        %v561 = vpop.permute.xlu0 %560
        %vm563 = vcmask 130048
        %v564 = vsel %vm563, %v551, %v561
        %vm565 = vcmask 261120
        %v567 = vsel %vm565, %v564, 0
        %569 = vmatprep.subr.mxu0 %v384
        %570 = vmatpush1.msra.mxu0 %v383
        %571 = vmatprep.subr.mxu0 %v386
        %572 = vmatpush1.msra.mxu0 %v385
        %573 = vmatprep.subr.mxu0 %v388
        %574 = vmatpush1.msra.mxu0 %v387
        %575 = vmatprep.subr.mxu0 %v390
        %576 = vmatpush1.msra.mxu0 %v389
        %577 = vmatprep.subr.mxu0 0.0
        %578 = vmatpush1.msra.mxu0 0.0
        %579 = vmatprep.subr.mxu0 0.0
        %580 = vmatpush1.msra.mxu0 0.0
        %581 = vmatprep.subr.mxu0 0.0
        %582 = vmatpush1.msra.mxu0 0.0
        %583 = vmatprep.subr.mxu0 0.0
        %584 = vmatpush1.msra.mxu0 0.0
        %585 = vmatprep.subr.mxu0 0.0
        %586 = vmatpush1.msra.mxu0 0.0
        %587 = vmatprep.subr.mxu0 0.0
        %588 = vmatpush1.msra.mxu0 0.0
        %589 = vmatprep.subr.mxu0 0.0
        %590 = vmatpush1.msra.mxu0 0.0
        %591 = vmatprep.subr.mxu0 0.0
        %592 = vmatpush1.msra.mxu0 0.0
        %593 = vmatprep.subr.mxu0 0.0
        %594 = vmatpush1.msra.mxu0 0.0
        %595 = vmatprep.subr.mxu0 0.0
        %596 = vmatpush1.msra.mxu0 0.0
        %597 = vmatprep.subr.mxu0 0.0
        %598 = vmatpush1.msra.mxu0 0.0
        %599 = vmatprep.subr.mxu0 0.0
        %600 = vmatpush1.msra.mxu0 0.0
        %601 = vmatprep.subr.mxu0 0.0
        %602 = vmatpush1.msra.mxu0 0.0
        %603 = vmatprep.subr.mxu0 0.0
        %604 = vmatpush1.msra.mxu0 0.0
        %605 = vmatprep.subr.mxu0 0.0
        %606 = vmatpush1.msra.mxu0 0.0
        %607 = vmatprep.subr.mxu0 0.0
        %608 = vmatpush1.msra.mxu0 0.0
        %609 = vmatprep.subr.mxu0 0.0
        %610 = vmatpush1.msra.mxu0 0.0
        %611 = vmatprep.subr.mxu0 0.0
        %612 = vmatpush1.msra.mxu0 0.0
        %613 = vmatprep.subr.mxu0 0.0
        %614 = vmatpush1.msra.mxu0 0.0
        %615 = vmatprep.subr.mxu0 0.0
        %616 = vmatpush1.msra.mxu0 0.0
        %617 = vmatprep.subr.mxu0 0.0
        %618 = vmatpush1.msra.mxu0 0.0
        %619 = vmatprep.subr.mxu0 0.0
        %620 = vmatpush1.msra.mxu0 0.0
        %621 = vmatprep.subr.mxu0 0.0
        %622 = vmatpush1.msra.mxu0 0.0
        %623 = vmatprep.subr.mxu0 0.0
        %624 = vmatpush1.msra.mxu0 0.0
        %625 = vmatprep.subr.mxu0 0.0
        %626 = vmatpush1.msra.mxu0 0.0
        %627 = vmatprep.subr.mxu0 0.0
        %628 = vmatpush1.msra.mxu0 0.0
        %629 = vmatprep.subr.mxu0 0.0
        %630 = vmatpush1.msra.mxu0 0.0
        %631 = vmatprep.subr.mxu0 0.0
        %632 = vmatpush1.msra.mxu0 0.0
        %633 = vmatprep.mubr.f32.mxu0 0.0
        %634 = vmatmul.mubr.f32.gmra.mrb[0].mxu0 %v567
        %v635 = vpop.f32.mrb[0].mxu0
        %v636 = vadd.f32 0.0, %v635
        %v637 = vpop.f32.mrb[0].mxu0
        %v638 = vadd.f32 0.0, %v637
        %639 = vdwg.mxu0
        %v640 = vtanh.pop %v636
        %v641 = vtanh.pop %v638
        %643 = vset.pattern.permute.xlu0 0
        %644 = vperm.xlu0 %643, %v365
        %v645 = vpop.permute.xlu0 %644
        %648 = vset.pattern.permute.xlu0 0
        %649 = vperm.xlu0 %648, %v366
        %v650 = vpop.permute.xlu0 %649
        %vm652 = vcmask 64512
        %v654 = vsel %vm652, %v363, 0
        %v657 = vsel %vm652, %v364, 0
        %659 = vmatprep.subr.mxu0 %v641
        %660 = vmatpush1.msra.mxu0 %v640
        %661 = vmatprep.subr.mxu0 0.0
        %662 = vmatpush1.msra.mxu0 0.0
        %663 = vmatprep.subr.mxu0 0.0
        %664 = vmatpush1.msra.mxu0 0.0
        %665 = vmatprep.subr.mxu0 0.0
        %666 = vmatpush1.msra.mxu0 0.0
        %667 = vmatprep.subr.mxu0 0.0
        %668 = vmatpush1.msra.mxu0 0.0
        %669 = vmatprep.subr.mxu0 0.0
        %670 = vmatpush1.msra.mxu0 0.0
        %671 = vmatprep.subr.mxu0 0.0
        %672 = vmatpush1.msra.mxu0 0.0
        %673 = vmatprep.subr.mxu0 0.0
        %674 = vmatpush1.msra.mxu0 0.0
        %675 = vmatprep.subr.mxu0 0.0
        %676 = vmatpush1.msra.mxu0 0.0
        %677 = vmatprep.subr.mxu0 0.0
        %678 = vmatpush1.msra.mxu0 0.0
        %679 = vmatprep.subr.mxu0 0.0
        %680 = vmatpush1.msra.mxu0 0.0
        %681 = vmatprep.subr.mxu0 0.0
        %682 = vmatpush1.msra.mxu0 0.0
        %683 = vmatprep.subr.mxu0 0.0
        %684 = vmatpush1.msra.mxu0 0.0
        %685 = vmatprep.subr.mxu0 0.0
        %686 = vmatpush1.msra.mxu0 0.0
        %687 = vmatprep.subr.mxu0 0.0
        %688 = vmatpush1.msra.mxu0 0.0
        %689 = vmatprep.subr.mxu0 0.0
        %690 = vmatpush1.msra.mxu0 0.0
        %691 = vmatprep.subr.mxu0 0.0
        %692 = vmatpush1.msra.mxu0 0.0
        %693 = vmatprep.subr.mxu0 0.0
        %694 = vmatpush1.msra.mxu0 0.0
        %695 = vmatprep.subr.mxu0 0.0
        %696 = vmatpush1.msra.mxu0 0.0
        %697 = vmatprep.subr.mxu0 0.0
        %698 = vmatpush1.msra.mxu0 0.0
        %699 = vmatprep.subr.mxu0 0.0
        %700 = vmatpush1.msra.mxu0 0.0
        %701 = vmatprep.subr.mxu0 0.0
        %702 = vmatpush1.msra.mxu0 0.0
        %703 = vmatprep.subr.mxu0 0.0
        %704 = vmatpush1.msra.mxu0 0.0
        %705 = vmatprep.subr.mxu0 0.0
        %706 = vmatpush1.msra.mxu0 0.0
        %707 = vmatprep.subr.mxu0 0.0
        %708 = vmatpush1.msra.mxu0 0.0
        %709 = vmatprep.subr.mxu0 0.0
        %710 = vmatpush1.msra.mxu0 0.0
        %711 = vmatprep.subr.mxu0 0.0
        %712 = vmatpush1.msra.mxu0 0.0
        %713 = vmatprep.subr.mxu0 0.0
        %714 = vmatpush1.msra.mxu0 0.0
        %715 = vmatprep.subr.mxu0 0.0
        %716 = vmatpush1.msra.mxu0 0.0
        %717 = vmatprep.subr.mxu0 0.0
        %718 = vmatpush1.msra.mxu0 0.0
        %719 = vmatprep.subr.mxu0 0.0
        %720 = vmatpush1.msra.mxu0 0.0
        %721 = vmatprep.subr.mxu0 0.0
        %722 = vmatpush1.msra.mxu0 0.0
        %723 = vmatprep.mubr.f32.mxu0 0.0
        %724 = vmatmul.mubr.f32.gmra.mrb[0].mxu0 %v654
        %v725 = vpop.f32.mrb[0].mxu0
        %v726 = vadd.f32 %v645, %v725
        %v727 = vpop.f32.mrb[0].mxu0
        %v728 = vadd.f32 %v645, %v727
        %729 = vmatprep.mubr.f32.mxu0 0.0
        %730 = vmatmul.mubr.f32.gmra.mrb[0].mxu0 %v657
        %v731 = vpop.f32.mrb[0].mxu0
        %v732 = vadd.f32 %v650, %v731
        %v733 = vpop.f32.mrb[0].mxu0
        %v734 = vadd.f32 %v650, %v733
        %735 = vdwg.mxu0
        %v736 = vmul.f32 %v726, 0.5
        %v737 = vmul.f32 %v728, 0.5
        %v738 = vmul.f32 %v732, 0.5
        %v739 = vmul.f32 %v734, 0.5
        %v741 = vlaneseq
        %v742 = vshrl.u32 %v741, 7
        %v743 = vsub.s32 0, %v742
        %v744 = vrot.slane %v391, %v743
        %v745 = vlaneseq
        %v746 = vshrl.u32 %v745, 7
        %v747 = vsub.s32 1, %v746
        %v748 = vrot.slane %v391, %v747
        %v751 = vadd.f32 %v736, %v744
        %v752 = vadd.f32 %v737, %v748
        %v753 = vadd.f32 %v738, %v744
        %v754 = vadd.f32 %v739, %v748
        %756 = vset.pattern.permute.xlu0 0
        %757 = vperm.xlu0 %756, %v361
        %v758 = vpop.permute.xlu0 %757
        %761 = vset.pattern.permute.xlu0 0
        %762 = vperm.xlu0 %761, %v362
        %v763 = vpop.permute.xlu0 %762
        %v766 = vsel %vm473, %v359, 0
        %v769 = vsel %vm473, %v360, 0
        %v772 = vsel %vm480, %v392, 0
        %774 = vmatprep.subr.mxu0 0.0
        %775 = vmatpush1.msra.mxu0 %v772
        %776 = vmatprep.subr.mxu0 0.0
        %777 = vmatpush1.msra.mxu0 0.0
        %778 = vmatprep.subr.mxu0 0.0
        %779 = vmatpush1.msra.mxu0 0.0
        %780 = vmatprep.subr.mxu0 0.0
        %781 = vmatpush1.msra.mxu0 0.0
        %782 = vmatprep.subr.mxu0 0.0
        %783 = vmatpush1.msra.mxu0 0.0
        %784 = vmatprep.subr.mxu0 0.0
        %785 = vmatpush1.msra.mxu0 0.0
        %786 = vmatprep.subr.mxu0 0.0
        %787 = vmatpush1.msra.mxu0 0.0
        %788 = vmatprep.subr.mxu0 0.0
        %789 = vmatpush1.msra.mxu0 0.0
        %790 = vmatprep.subr.mxu0 0.0
        %791 = vmatpush1.msra.mxu0 0.0
        %792 = vmatprep.subr.mxu0 0.0
        %793 = vmatpush1.msra.mxu0 0.0
        %794 = vmatprep.subr.mxu0 0.0
        %795 = vmatpush1.msra.mxu0 0.0
        %796 = vmatprep.subr.mxu0 0.0
        %797 = vmatpush1.msra.mxu0 0.0
        %798 = vmatprep.subr.mxu0 0.0
        %799 = vmatpush1.msra.mxu0 0.0
        %800 = vmatprep.subr.mxu0 0.0
        %801 = vmatpush1.msra.mxu0 0.0
        %802 = vmatprep.subr.mxu0 0.0
        %803 = vmatpush1.msra.mxu0 0.0
        %804 = vmatprep.subr.mxu0 0.0
        %805 = vmatpush1.msra.mxu0 0.0
        %806 = vmatprep.subr.mxu0 0.0
        %807 = vmatpush1.msra.mxu0 0.0
        %808 = vmatprep.subr.mxu0 0.0
        %809 = vmatpush1.msra.mxu0 0.0
        %810 = vmatprep.subr.mxu0 0.0
        %811 = vmatpush1.msra.mxu0 0.0
        %812 = vmatprep.subr.mxu0 0.0
        %813 = vmatpush1.msra.mxu0 0.0
        %814 = vmatprep.subr.mxu0 0.0
        %815 = vmatpush1.msra.mxu0 0.0
        %816 = vmatprep.subr.mxu0 0.0
        %817 = vmatpush1.msra.mxu0 0.0
        %818 = vmatprep.subr.mxu0 0.0
        %819 = vmatpush1.msra.mxu0 0.0
        %820 = vmatprep.subr.mxu0 0.0
        %821 = vmatpush1.msra.mxu0 0.0
        %822 = vmatprep.subr.mxu0 0.0
        %823 = vmatpush1.msra.mxu0 0.0
        %824 = vmatprep.subr.mxu0 0.0
        %825 = vmatpush1.msra.mxu0 0.0
        %826 = vmatprep.subr.mxu0 0.0
        %827 = vmatpush1.msra.mxu0 0.0
        %828 = vmatprep.subr.mxu0 0.0
        %829 = vmatpush1.msra.mxu0 0.0
        %830 = vmatprep.subr.mxu0 0.0
        %831 = vmatpush1.msra.mxu0 0.0
        %832 = vmatprep.subr.mxu0 0.0
        %833 = vmatpush1.msra.mxu0 0.0
        %834 = vmatprep.subr.mxu0 0.0
        %835 = vmatpush1.msra.mxu0 0.0
        %836 = vmatprep.subr.mxu0 0.0
        %837 = vmatpush1.msra.mxu0 0.0
        %838 = vmatprep.mubr.f32.mxu0 0.0
        %839 = vmatmul.mubr.f32.gmra.mrb[0].mxu0 %v766
        %v840 = vpop.f32.mrb[0].mxu0
        %v841 = vadd.f32 %v758, %v840
        %v842 = vpop.f32.mrb[0].mxu0
        %843 = vmatprep.mubr.f32.mxu0 0.0
        %844 = vmatmul.mubr.f32.gmra.mrb[0].mxu0 %v769
        %v845 = vpop.f32.mrb[0].mxu0
        %v846 = vadd.f32 %v763, %v845
        %v847 = vpop.f32.mrb[0].mxu0
        %848 = vdwg.mxu0
        %851 = vrot.lane.b32.xlu0 %v841, 112
        %v852 = vpop.permute.xlu0 %851
        %853 = vrot.lane.b32.xlu0 %v846, 112
        %v854 = vpop.permute.xlu0 %853
        %857 = vrot.lane.b32.xlu0 %v841, 96
        %v858 = vpop.permute.xlu0 %857
        %859 = vrot.lane.b32.xlu0 %v846, 96
        %v860 = vpop.permute.xlu0 %859
        %863 = vrot.lane.b32.xlu0 %v841, 80
        %v864 = vpop.permute.xlu0 %863
        %865 = vrot.lane.b32.xlu0 %v846, 80
        %v866 = vpop.permute.xlu0 %865
        %869 = vrot.lane.b32.xlu0 %v841, 64
        %v870 = vpop.permute.xlu0 %869
        %871 = vrot.lane.b32.xlu0 %v846, 64
        %v872 = vpop.permute.xlu0 %871
        %875 = vrot.lane.b32.xlu0 %v841, 48
        %v876 = vpop.permute.xlu0 %875
        %877 = vrot.lane.b32.xlu0 %v846, 48
        %v878 = vpop.permute.xlu0 %877
        %881 = vrot.lane.b32.xlu0 %v841, 32
        %v882 = vpop.permute.xlu0 %881
        %883 = vrot.lane.b32.xlu0 %v846, 32
        %v884 = vpop.permute.xlu0 %883
        %887 = vrot.lane.b32.xlu0 %v841, 16
        %v888 = vpop.permute.xlu0 %887
        %889 = vrot.lane.b32.xlu0 %v846, 16
        %v890 = vpop.permute.xlu0 %889
        %v893 = vcombine.low %v841, %v858
        %v894 = vcombine.high %v841, %v858
        %v896 = vunpack.c.l.s4 1983009808
        %v897 = vunpack.c.0.s8 %v896
        %v898 = vlaneseq
        %v899 = vshrl.u32 %v898, 7
        %v900 = vsub.s32 %v897, %v899
        %v901 = vrot.slane %v893, %v900
        %v903 = vunpack.c.l.s4 1983009808
        %v904 = vunpack.c.0.s8 %v903
        %v905 = vlaneseq
        %v906 = vshrl.u32 %v905, 7
        %v907 = vsub.s32 %v904, %v906
        %v908 = vrot.slane %v894, %v907
        %v909 = vcombine.low %v852, %v864
        %v910 = vcombine.high %v852, %v864
        %v912 = vunpack.c.l.s4 1983009808
        %v913 = vunpack.c.0.s8 %v912
        %v914 = vlaneseq
        %v915 = vshrl.u32 %v914, 7
        %v916 = vsub.s32 %v913, %v915
        %v917 = vrot.slane %v909, %v916
        %v919 = vunpack.c.l.s4 1983009808
        %v920 = vunpack.c.0.s8 %v919
        %v921 = vlaneseq
        %v922 = vshrl.u32 %v921, 7
        %v923 = vsub.s32 %v920, %v922
        %v924 = vrot.slane %v910, %v923
        %v925 = vcombine.low %v870, %v882
        %v926 = vcombine.high %v870, %v882
        %v928 = vunpack.c.l.s4 1983009808
        %v929 = vunpack.c.0.s8 %v928
        %v930 = vlaneseq
        %v931 = vshrl.u32 %v930, 7
        %v932 = vsub.s32 %v929, %v931
        %v933 = vrot.slane %v925, %v932
        %v935 = vunpack.c.l.s4 1983009808
        %v936 = vunpack.c.0.s8 %v935
        %v937 = vlaneseq
        %v938 = vshrl.u32 %v937, 7
        %v939 = vsub.s32 %v936, %v938
        %v940 = vrot.slane %v926, %v939
        %v941 = vcombine.low %v876, %v888
        %v942 = vcombine.high %v876, %v888
        %v944 = vunpack.c.l.s4 1983009808
        %v945 = vunpack.c.0.s8 %v944
        %v946 = vlaneseq
        %v947 = vshrl.u32 %v946, 7
        %v948 = vsub.s32 %v945, %v947
        %v949 = vrot.slane %v941, %v948
        %v951 = vunpack.c.l.s4 1983009808
        %v952 = vunpack.c.0.s8 %v951
        %v953 = vlaneseq
        %v954 = vshrl.u32 %v953, 7
        %v955 = vsub.s32 %v952, %v954
        %v956 = vrot.slane %v942, %v955
        %v957 = vcombine.low %v901, %v917
        %v958 = vcombine.high %v901, %v917
        %v960 = vunpack.c.l.s4 1934713408
        %v961 = vunpack.c.0.s8 %v960
        %v962 = vlaneseq
        %v963 = vshrl.u32 %v962, 7
        %v964 = vsub.s32 %v961, %v963
        %v965 = vrot.slane %v957, %v964
        %v967 = vunpack.c.l.s4 1934713408
        %v968 = vunpack.c.0.s8 %v967
        %v969 = vlaneseq
        %v970 = vshrl.u32 %v969, 7
        %v971 = vsub.s32 %v968, %v970
        %v972 = vrot.slane %v958, %v971
        %v973 = vcombine.low %v908, %v924
        %v974 = vcombine.high %v908, %v924
        %v976 = vunpack.c.l.s4 1934713408
        %v977 = vunpack.c.0.s8 %v976
        %v978 = vlaneseq
        %v979 = vshrl.u32 %v978, 7
        %v980 = vsub.s32 %v977, %v979
        %v981 = vrot.slane %v973, %v980
        %v983 = vunpack.c.l.s4 1934713408
        %v984 = vunpack.c.0.s8 %v983
        %v985 = vlaneseq
        %v986 = vshrl.u32 %v985, 7
        %v987 = vsub.s32 %v984, %v986
        %v988 = vrot.slane %v974, %v987
        %v989 = vcombine.low %v933, %v949
        %v990 = vcombine.high %v933, %v949
        %v992 = vunpack.c.l.s4 1934713408
        %v993 = vunpack.c.0.s8 %v992
        %v994 = vlaneseq
        %v995 = vshrl.u32 %v994, 7
        %v996 = vsub.s32 %v993, %v995
        %v997 = vrot.slane %v989, %v996
        %v999 = vunpack.c.l.s4 1934713408
        %v1000 = vunpack.c.0.s8 %v999
        %v1001 = vlaneseq
        %v1002 = vshrl.u32 %v1001, 7
        %v1003 = vsub.s32 %v1000, %v1002
        %v1004 = vrot.slane %v990, %v1003
        %v1005 = vcombine.low %v940, %v956
        %v1006 = vcombine.high %v940, %v956
        %v1008 = vunpack.c.l.s4 1934713408
        %v1009 = vunpack.c.0.s8 %v1008
        %v1010 = vlaneseq
        %v1011 = vshrl.u32 %v1010, 7
        %v1012 = vsub.s32 %v1009, %v1011
        %v1013 = vrot.slane %v1005, %v1012
        %v1015 = vunpack.c.l.s4 1934713408
        %v1016 = vunpack.c.0.s8 %v1015
        %v1017 = vlaneseq
        %v1018 = vshrl.u32 %v1017, 7
        %v1019 = vsub.s32 %v1016, %v1018
        %v1020 = vrot.slane %v1006, %v1019
        %v1021 = vcombine.low %v965, %v997
        %v1022 = vcombine.high %v965, %v997
        %v1023 = vcombine.low %v972, %v1004
        %v1024 = vcombine.high %v972, %v1004
        %v1025 = vcombine.low %v981, %v1013
        %v1026 = vcombine.high %v981, %v1013
        %v1027 = vcombine.low %v988, %v1020
        %v1028 = vcombine.high %v988, %v1020
        %v1029 = vcombine.low %v846, %v860
        %v1030 = vcombine.high %v846, %v860
        %v1032 = vunpack.c.l.s4 1983009808
        %v1033 = vunpack.c.0.s8 %v1032
        %v1034 = vlaneseq
        %v1035 = vshrl.u32 %v1034, 7
        %v1036 = vsub.s32 %v1033, %v1035
        %v1037 = vrot.slane %v1029, %v1036
        %v1039 = vunpack.c.l.s4 1983009808
        %v1040 = vunpack.c.0.s8 %v1039
        %v1041 = vlaneseq
        %v1042 = vshrl.u32 %v1041, 7
        %v1043 = vsub.s32 %v1040, %v1042
        %v1044 = vrot.slane %v1030, %v1043
        %v1045 = vcombine.low %v854, %v866
        %v1046 = vcombine.high %v854, %v866
        %v1048 = vunpack.c.l.s4 1983009808
        %v1049 = vunpack.c.0.s8 %v1048
        %v1050 = vlaneseq
        %v1051 = vshrl.u32 %v1050, 7
        %v1052 = vsub.s32 %v1049, %v1051
        %v1053 = vrot.slane %v1045, %v1052
        %v1055 = vunpack.c.l.s4 1983009808
        %v1056 = vunpack.c.0.s8 %v1055
        %v1057 = vlaneseq
        %v1058 = vshrl.u32 %v1057, 7
        %v1059 = vsub.s32 %v1056, %v1058
        %v1060 = vrot.slane %v1046, %v1059
        %v1061 = vcombine.low %v872, %v884
        %v1062 = vcombine.high %v872, %v884
        %v1064 = vunpack.c.l.s4 1983009808
        %v1065 = vunpack.c.0.s8 %v1064
        %v1066 = vlaneseq
        %v1067 = vshrl.u32 %v1066, 7
        %v1068 = vsub.s32 %v1065, %v1067
        %v1069 = vrot.slane %v1061, %v1068
        %v1071 = vunpack.c.l.s4 1983009808
        %v1072 = vunpack.c.0.s8 %v1071
        %v1073 = vlaneseq
        %v1074 = vshrl.u32 %v1073, 7
        %v1075 = vsub.s32 %v1072, %v1074
        %v1076 = vrot.slane %v1062, %v1075
        %v1077 = vcombine.low %v878, %v890
        %v1078 = vcombine.high %v878, %v890
        %v1080 = vunpack.c.l.s4 1983009808
        %v1081 = vunpack.c.0.s8 %v1080
        %v1082 = vlaneseq
        %v1083 = vshrl.u32 %v1082, 7
        %v1084 = vsub.s32 %v1081, %v1083
        %v1085 = vrot.slane %v1077, %v1084
        %v1087 = vunpack.c.l.s4 1983009808
        %v1088 = vunpack.c.0.s8 %v1087
        %v1089 = vlaneseq
        %v1090 = vshrl.u32 %v1089, 7
        %v1091 = vsub.s32 %v1088, %v1090
        %v1092 = vrot.slane %v1078, %v1091
        %v1093 = vcombine.low %v1037, %v1053
        %v1094 = vcombine.high %v1037, %v1053
        %v1096 = vunpack.c.l.s4 1934713408
        %v1097 = vunpack.c.0.s8 %v1096
        %v1098 = vlaneseq
        %v1099 = vshrl.u32 %v1098, 7
        %v1100 = vsub.s32 %v1097, %v1099
        %v1101 = vrot.slane %v1093, %v1100
        %v1103 = vunpack.c.l.s4 1934713408
        %v1104 = vunpack.c.0.s8 %v1103
        %v1105 = vlaneseq
        %v1106 = vshrl.u32 %v1105, 7
        %v1107 = vsub.s32 %v1104, %v1106
        %v1108 = vrot.slane %v1094, %v1107
        %v1109 = vcombine.low %v1044, %v1060
        %v1110 = vcombine.high %v1044, %v1060
        %v1112 = vunpack.c.l.s4 1934713408
        %v1113 = vunpack.c.0.s8 %v1112
        %v1114 = vlaneseq
        %v1115 = vshrl.u32 %v1114, 7
        %v1116 = vsub.s32 %v1113, %v1115
        %v1117 = vrot.slane %v1109, %v1116
        %v1119 = vunpack.c.l.s4 1934713408
        %v1120 = vunpack.c.0.s8 %v1119
        %v1121 = vlaneseq
        %v1122 = vshrl.u32 %v1121, 7
        %v1123 = vsub.s32 %v1120, %v1122
        %v1124 = vrot.slane %v1110, %v1123
        %v1125 = vcombine.low %v1069, %v1085
        %v1126 = vcombine.high %v1069, %v1085
        %v1128 = vunpack.c.l.s4 1934713408
        %v1129 = vunpack.c.0.s8 %v1128
        %v1130 = vlaneseq
        %v1131 = vshrl.u32 %v1130, 7
        %v1132 = vsub.s32 %v1129, %v1131
        %v1133 = vrot.slane %v1125, %v1132
        %v1135 = vunpack.c.l.s4 1934713408
        %v1136 = vunpack.c.0.s8 %v1135
        %v1137 = vlaneseq
        %v1138 = vshrl.u32 %v1137, 7
        %v1139 = vsub.s32 %v1136, %v1138
        %v1140 = vrot.slane %v1126, %v1139
        %v1141 = vcombine.low %v1076, %v1092
        %v1142 = vcombine.high %v1076, %v1092
        %v1144 = vunpack.c.l.s4 1934713408
        %v1145 = vunpack.c.0.s8 %v1144
        %v1146 = vlaneseq
        %v1147 = vshrl.u32 %v1146, 7
        %v1148 = vsub.s32 %v1145, %v1147
        %v1149 = vrot.slane %v1141, %v1148
        %v1151 = vunpack.c.l.s4 1934713408
        %v1152 = vunpack.c.0.s8 %v1151
        %v1153 = vlaneseq
        %v1154 = vshrl.u32 %v1153, 7
        %v1155 = vsub.s32 %v1152, %v1154
        %v1156 = vrot.slane %v1142, %v1155
        %v1157 = vcombine.low %v1101, %v1133
        %v1158 = vcombine.high %v1101, %v1133
        %v1159 = vcombine.low %v1108, %v1140
        %v1160 = vcombine.high %v1108, %v1140
        %v1161 = vcombine.low %v1117, %v1149
        %v1162 = vcombine.high %v1117, %v1149
        %v1163 = vcombine.low %v1124, %v1156
        %v1164 = vcombine.high %v1124, %v1156
        %1167 = vrot.lane.b32.xlu0 %v751, 112
        %v1168 = vpop.permute.xlu0 %1167
        %1169 = vrot.lane.b32.xlu0 %v753, 112
        %v1170 = vpop.permute.xlu0 %1169
        %1173 = vrot.lane.b32.xlu0 %v751, 96
        %v1174 = vpop.permute.xlu0 %1173
        %1175 = vrot.lane.b32.xlu0 %v753, 96
        %v1176 = vpop.permute.xlu0 %1175
        %1179 = vrot.lane.b32.xlu0 %v751, 80
        %v1180 = vpop.permute.xlu0 %1179
        %1181 = vrot.lane.b32.xlu0 %v753, 80
        %v1182 = vpop.permute.xlu0 %1181
        %1185 = vrot.lane.b32.xlu0 %v751, 64
        %v1186 = vpop.permute.xlu0 %1185
        %1187 = vrot.lane.b32.xlu0 %v753, 64
        %v1188 = vpop.permute.xlu0 %1187
        %1191 = vrot.lane.b32.xlu0 %v751, 48
        %v1192 = vpop.permute.xlu0 %1191
        %1193 = vrot.lane.b32.xlu0 %v753, 48
        %v1194 = vpop.permute.xlu0 %1193
        %1197 = vrot.lane.b32.xlu0 %v751, 32
        %v1198 = vpop.permute.xlu0 %1197
        %1199 = vrot.lane.b32.xlu0 %v753, 32
        %v1200 = vpop.permute.xlu0 %1199
        %1203 = vrot.lane.b32.xlu0 %v751, 16
        %v1204 = vpop.permute.xlu0 %1203
        %1205 = vrot.lane.b32.xlu0 %v753, 16
        %v1206 = vpop.permute.xlu0 %1205
        %1211 = vrot.lane.b32.xlu0 %v752, 112
        %v1212 = vpop.permute.xlu0 %1211
        %1213 = vrot.lane.b32.xlu0 %v754, 112
        %v1214 = vpop.permute.xlu0 %1213
        %1217 = vrot.lane.b32.xlu0 %v752, 96
        %v1218 = vpop.permute.xlu0 %1217
        %1219 = vrot.lane.b32.xlu0 %v754, 96
        %v1220 = vpop.permute.xlu0 %1219
        %1223 = vrot.lane.b32.xlu0 %v752, 80
        %v1224 = vpop.permute.xlu0 %1223
        %1225 = vrot.lane.b32.xlu0 %v754, 80
        %v1226 = vpop.permute.xlu0 %1225
        %1229 = vrot.lane.b32.xlu0 %v752, 64
        %v1230 = vpop.permute.xlu0 %1229
        %1231 = vrot.lane.b32.xlu0 %v754, 64
        %v1232 = vpop.permute.xlu0 %1231
        %1235 = vrot.lane.b32.xlu0 %v752, 48
        %v1236 = vpop.permute.xlu0 %1235
        %1237 = vrot.lane.b32.xlu0 %v754, 48
        %v1238 = vpop.permute.xlu0 %1237
        %1241 = vrot.lane.b32.xlu0 %v752, 32
        %v1242 = vpop.permute.xlu0 %1241
        %1243 = vrot.lane.b32.xlu0 %v754, 32
        %v1244 = vpop.permute.xlu0 %1243
        %1247 = vrot.lane.b32.xlu0 %v752, 16
        %v1248 = vpop.permute.xlu0 %1247
        %1249 = vrot.lane.b32.xlu0 %v754, 16
        %v1250 = vpop.permute.xlu0 %1249
        %v1253 = vcombine.low %v751, %v1174
        %v1254 = vcombine.high %v751, %v1174
        %v1256 = vunpack.c.l.s4 1983009808
        %v1257 = vunpack.c.0.s8 %v1256
        %v1258 = vlaneseq
        %v1259 = vshrl.u32 %v1258, 7
        %v1260 = vsub.s32 %v1257, %v1259
        %v1261 = vrot.slane %v1253, %v1260
        %v1263 = vunpack.c.l.s4 1983009808
        %v1264 = vunpack.c.0.s8 %v1263
        %v1265 = vlaneseq
        %v1266 = vshrl.u32 %v1265, 7
        %v1267 = vsub.s32 %v1264, %v1266
        %v1268 = vrot.slane %v1254, %v1267
        %v1269 = vcombine.low %v1168, %v1180
        %v1270 = vcombine.high %v1168, %v1180
        %v1272 = vunpack.c.l.s4 1983009808
        %v1273 = vunpack.c.0.s8 %v1272
        %v1274 = vlaneseq
        %v1275 = vshrl.u32 %v1274, 7
        %v1276 = vsub.s32 %v1273, %v1275
        %v1277 = vrot.slane %v1269, %v1276
        %v1279 = vunpack.c.l.s4 1983009808
        %v1280 = vunpack.c.0.s8 %v1279
        %v1281 = vlaneseq
        %v1282 = vshrl.u32 %v1281, 7
        %v1283 = vsub.s32 %v1280, %v1282
        %v1284 = vrot.slane %v1270, %v1283
        %v1285 = vcombine.low %v1186, %v1198
        %v1286 = vcombine.high %v1186, %v1198
        %v1288 = vunpack.c.l.s4 1983009808
        %v1289 = vunpack.c.0.s8 %v1288
        %v1290 = vlaneseq
        %v1291 = vshrl.u32 %v1290, 7
        %v1292 = vsub.s32 %v1289, %v1291
        %v1293 = vrot.slane %v1285, %v1292
        %v1295 = vunpack.c.l.s4 1983009808
        %v1296 = vunpack.c.0.s8 %v1295
        %v1297 = vlaneseq
        %v1298 = vshrl.u32 %v1297, 7
        %v1299 = vsub.s32 %v1296, %v1298
        %v1300 = vrot.slane %v1286, %v1299
        %v1301 = vcombine.low %v1192, %v1204
        %v1302 = vcombine.high %v1192, %v1204
        %v1304 = vunpack.c.l.s4 1983009808
        %v1305 = vunpack.c.0.s8 %v1304
        %v1306 = vlaneseq
        %v1307 = vshrl.u32 %v1306, 7
        %v1308 = vsub.s32 %v1305, %v1307
        %v1309 = vrot.slane %v1301, %v1308
        %v1311 = vunpack.c.l.s4 1983009808
        %v1312 = vunpack.c.0.s8 %v1311
        %v1313 = vlaneseq
        %v1314 = vshrl.u32 %v1313, 7
        %v1315 = vsub.s32 %v1312, %v1314
        %v1316 = vrot.slane %v1302, %v1315
        %v1317 = vcombine.low %v1261, %v1277
        %v1318 = vcombine.high %v1261, %v1277
        %v1320 = vunpack.c.l.s4 1934713408
        %v1321 = vunpack.c.0.s8 %v1320
        %v1322 = vlaneseq
        %v1323 = vshrl.u32 %v1322, 7
        %v1324 = vsub.s32 %v1321, %v1323
        %v1325 = vrot.slane %v1317, %v1324
        %v1327 = vunpack.c.l.s4 1934713408
        %v1328 = vunpack.c.0.s8 %v1327
        %v1329 = vlaneseq
        %v1330 = vshrl.u32 %v1329, 7
        %v1331 = vsub.s32 %v1328, %v1330
        %v1332 = vrot.slane %v1318, %v1331
        %v1333 = vcombine.low %v1268, %v1284
        %v1334 = vcombine.high %v1268, %v1284
        %v1336 = vunpack.c.l.s4 1934713408
        %v1337 = vunpack.c.0.s8 %v1336
        %v1338 = vlaneseq
        %v1339 = vshrl.u32 %v1338, 7
        %v1340 = vsub.s32 %v1337, %v1339
        %v1341 = vrot.slane %v1333, %v1340
        %v1343 = vunpack.c.l.s4 1934713408
        %v1344 = vunpack.c.0.s8 %v1343
        %v1345 = vlaneseq
        %v1346 = vshrl.u32 %v1345, 7
        %v1347 = vsub.s32 %v1344, %v1346
        %v1348 = vrot.slane %v1334, %v1347
        %v1349 = vcombine.low %v1293, %v1309
        %v1350 = vcombine.high %v1293, %v1309
        %v1352 = vunpack.c.l.s4 1934713408
        %v1353 = vunpack.c.0.s8 %v1352
        %v1354 = vlaneseq
        %v1355 = vshrl.u32 %v1354, 7
        %v1356 = vsub.s32 %v1353, %v1355
        %v1357 = vrot.slane %v1349, %v1356
        %v1359 = vunpack.c.l.s4 1934713408
        %v1360 = vunpack.c.0.s8 %v1359
        %v1361 = vlaneseq
        %v1362 = vshrl.u32 %v1361, 7
        %v1363 = vsub.s32 %v1360, %v1362
        %v1364 = vrot.slane %v1350, %v1363
        %v1365 = vcombine.low %v1300, %v1316
        %v1366 = vcombine.high %v1300, %v1316
        %v1368 = vunpack.c.l.s4 1934713408
        %v1369 = vunpack.c.0.s8 %v1368
        %v1370 = vlaneseq
        %v1371 = vshrl.u32 %v1370, 7
        %v1372 = vsub.s32 %v1369, %v1371
        %v1373 = vrot.slane %v1365, %v1372
        %v1375 = vunpack.c.l.s4 1934713408
        %v1376 = vunpack.c.0.s8 %v1375
        %v1377 = vlaneseq
        %v1378 = vshrl.u32 %v1377, 7
        %v1379 = vsub.s32 %v1376, %v1378
        %v1380 = vrot.slane %v1366, %v1379
        %v1381 = vcombine.low %v1325, %v1357
        %v1382 = vcombine.high %v1325, %v1357
        %v1383 = vcombine.low %v1332, %v1364
        %v1384 = vcombine.high %v1332, %v1364
        %v1385 = vcombine.low %v1341, %v1373
        %v1386 = vcombine.high %v1341, %v1373
        %v1387 = vcombine.low %v1348, %v1380
        %v1388 = vcombine.high %v1348, %v1380
        %v1389 = vcombine.low %v752, %v1218
        %v1390 = vcombine.high %v752, %v1218
        %v1392 = vunpack.c.l.s4 1983009808
        %v1393 = vunpack.c.0.s8 %v1392
        %v1394 = vlaneseq
        %v1395 = vshrl.u32 %v1394, 7
        %v1396 = vsub.s32 %v1393, %v1395
        %v1397 = vrot.slane %v1389, %v1396
        %v1399 = vunpack.c.l.s4 1983009808
        %v1400 = vunpack.c.0.s8 %v1399
        %v1401 = vlaneseq
        %v1402 = vshrl.u32 %v1401, 7
        %v1403 = vsub.s32 %v1400, %v1402
        %v1404 = vrot.slane %v1390, %v1403
        %v1405 = vcombine.low %v1212, %v1224
        %v1406 = vcombine.high %v1212, %v1224
        %v1408 = vunpack.c.l.s4 1983009808
        %v1409 = vunpack.c.0.s8 %v1408
        %v1410 = vlaneseq
        %v1411 = vshrl.u32 %v1410, 7
        %v1412 = vsub.s32 %v1409, %v1411
        %v1413 = vrot.slane %v1405, %v1412
        %v1415 = vunpack.c.l.s4 1983009808
        %v1416 = vunpack.c.0.s8 %v1415
        %v1417 = vlaneseq
        %v1418 = vshrl.u32 %v1417, 7
        %v1419 = vsub.s32 %v1416, %v1418
        %v1420 = vrot.slane %v1406, %v1419
        %v1421 = vcombine.low %v1230, %v1242
        %v1422 = vcombine.high %v1230, %v1242
        %v1424 = vunpack.c.l.s4 1983009808
        %v1425 = vunpack.c.0.s8 %v1424
        %v1426 = vlaneseq
        %v1427 = vshrl.u32 %v1426, 7
        %v1428 = vsub.s32 %v1425, %v1427
        %v1429 = vrot.slane %v1421, %v1428
        %v1431 = vunpack.c.l.s4 1983009808
        %v1432 = vunpack.c.0.s8 %v1431
        %v1433 = vlaneseq
        %v1434 = vshrl.u32 %v1433, 7
        %v1435 = vsub.s32 %v1432, %v1434
        %v1436 = vrot.slane %v1422, %v1435
        %v1437 = vcombine.low %v1236, %v1248
        %v1438 = vcombine.high %v1236, %v1248
        %v1440 = vunpack.c.l.s4 1983009808
        %v1441 = vunpack.c.0.s8 %v1440
        %v1442 = vlaneseq
        %v1443 = vshrl.u32 %v1442, 7
        %v1444 = vsub.s32 %v1441, %v1443
        %v1445 = vrot.slane %v1437, %v1444
        %v1447 = vunpack.c.l.s4 1983009808
        %v1448 = vunpack.c.0.s8 %v1447
        %v1449 = vlaneseq
        %v1450 = vshrl.u32 %v1449, 7
        %v1451 = vsub.s32 %v1448, %v1450
        %v1452 = vrot.slane %v1438, %v1451
        %v1453 = vcombine.low %v1397, %v1413
        %v1454 = vcombine.high %v1397, %v1413
        %v1456 = vunpack.c.l.s4 1934713408
        %v1457 = vunpack.c.0.s8 %v1456
        %v1458 = vlaneseq
        %v1459 = vshrl.u32 %v1458, 7
        %v1460 = vsub.s32 %v1457, %v1459
        %v1461 = vrot.slane %v1453, %v1460
        %v1463 = vunpack.c.l.s4 1934713408
        %v1464 = vunpack.c.0.s8 %v1463
        %v1465 = vlaneseq
        %v1466 = vshrl.u32 %v1465, 7
        %v1467 = vsub.s32 %v1464, %v1466
        %v1468 = vrot.slane %v1454, %v1467
        %v1469 = vcombine.low %v1404, %v1420
        %v1470 = vcombine.high %v1404, %v1420
        %v1472 = vunpack.c.l.s4 1934713408
        %v1473 = vunpack.c.0.s8 %v1472
        %v1474 = vlaneseq
        %v1475 = vshrl.u32 %v1474, 7
        %v1476 = vsub.s32 %v1473, %v1475
        %v1477 = vrot.slane %v1469, %v1476
        %v1479 = vunpack.c.l.s4 1934713408
        %v1480 = vunpack.c.0.s8 %v1479
        %v1481 = vlaneseq
        %v1482 = vshrl.u32 %v1481, 7
        %v1483 = vsub.s32 %v1480, %v1482
        %v1484 = vrot.slane %v1470, %v1483
        %v1485 = vcombine.low %v1429, %v1445
        %v1486 = vcombine.high %v1429, %v1445
        %v1488 = vunpack.c.l.s4 1934713408
        %v1489 = vunpack.c.0.s8 %v1488
        %v1490 = vlaneseq
        %v1491 = vshrl.u32 %v1490, 7
        %v1492 = vsub.s32 %v1489, %v1491
        %v1493 = vrot.slane %v1485, %v1492
        %v1495 = vunpack.c.l.s4 1934713408
        %v1496 = vunpack.c.0.s8 %v1495
        %v1497 = vlaneseq
        %v1498 = vshrl.u32 %v1497, 7
        %v1499 = vsub.s32 %v1496, %v1498
        %v1500 = vrot.slane %v1486, %v1499
        %v1501 = vcombine.low %v1436, %v1452
        %v1502 = vcombine.high %v1436, %v1452
        %v1504 = vunpack.c.l.s4 1934713408
        %v1505 = vunpack.c.0.s8 %v1504
        %v1506 = vlaneseq
        %v1507 = vshrl.u32 %v1506, 7
        %v1508 = vsub.s32 %v1505, %v1507
        %v1509 = vrot.slane %v1501, %v1508
        %v1511 = vunpack.c.l.s4 1934713408
        %v1512 = vunpack.c.0.s8 %v1511
        %v1513 = vlaneseq
        %v1514 = vshrl.u32 %v1513, 7
        %v1515 = vsub.s32 %v1512, %v1514
        %v1516 = vrot.slane %v1502, %v1515
        %v1517 = vcombine.low %v1461, %v1493
        %v1518 = vcombine.high %v1461, %v1493
        %v1519 = vcombine.low %v1468, %v1500
        %v1520 = vcombine.high %v1468, %v1500
        %v1521 = vcombine.low %v1477, %v1509
        %v1522 = vcombine.high %v1477, %v1509
        %v1523 = vcombine.low %v1484, %v1516
        %v1524 = vcombine.high %v1484, %v1516
        %v1525 = vcombine.low %v753, %v1176
        %v1526 = vcombine.high %v753, %v1176
        %v1528 = vunpack.c.l.s4 1983009808
        %v1529 = vunpack.c.0.s8 %v1528
        %v1530 = vlaneseq
        %v1531 = vshrl.u32 %v1530, 7
        %v1532 = vsub.s32 %v1529, %v1531
        %v1533 = vrot.slane %v1525, %v1532
        %v1535 = vunpack.c.l.s4 1983009808
        %v1536 = vunpack.c.0.s8 %v1535
        %v1537 = vlaneseq
        %v1538 = vshrl.u32 %v1537, 7
        %v1539 = vsub.s32 %v1536, %v1538
        %v1540 = vrot.slane %v1526, %v1539
        %v1541 = vcombine.low %v1170, %v1182
        %v1542 = vcombine.high %v1170, %v1182
        %v1544 = vunpack.c.l.s4 1983009808
        %v1545 = vunpack.c.0.s8 %v1544
        %v1546 = vlaneseq
        %v1547 = vshrl.u32 %v1546, 7
        %v1548 = vsub.s32 %v1545, %v1547
        %v1549 = vrot.slane %v1541, %v1548
        %v1551 = vunpack.c.l.s4 1983009808
        %v1552 = vunpack.c.0.s8 %v1551
        %v1553 = vlaneseq
        %v1554 = vshrl.u32 %v1553, 7
        %v1555 = vsub.s32 %v1552, %v1554
        %v1556 = vrot.slane %v1542, %v1555
        %v1557 = vcombine.low %v1188, %v1200
        %v1558 = vcombine.high %v1188, %v1200
        %v1560 = vunpack.c.l.s4 1983009808
        %v1561 = vunpack.c.0.s8 %v1560
        %v1562 = vlaneseq
        %v1563 = vshrl.u32 %v1562, 7
        %v1564 = vsub.s32 %v1561, %v1563
        %v1565 = vrot.slane %v1557, %v1564
        %v1567 = vunpack.c.l.s4 1983009808
        %v1568 = vunpack.c.0.s8 %v1567
        %v1569 = vlaneseq
        %v1570 = vshrl.u32 %v1569, 7
        %v1571 = vsub.s32 %v1568, %v1570
        %v1572 = vrot.slane %v1558, %v1571
        %v1573 = vcombine.low %v1194, %v1206
        %v1574 = vcombine.high %v1194, %v1206
        %v1576 = vunpack.c.l.s4 1983009808
        %v1577 = vunpack.c.0.s8 %v1576
        %v1578 = vlaneseq
        %v1579 = vshrl.u32 %v1578, 7
        %v1580 = vsub.s32 %v1577, %v1579
        %v1581 = vrot.slane %v1573, %v1580
        %v1583 = vunpack.c.l.s4 1983009808
        %v1584 = vunpack.c.0.s8 %v1583
        %v1585 = vlaneseq
        %v1586 = vshrl.u32 %v1585, 7
        %v1587 = vsub.s32 %v1584, %v1586
        %v1588 = vrot.slane %v1574, %v1587
        %v1589 = vcombine.low %v1533, %v1549
        %v1590 = vcombine.high %v1533, %v1549
        %v1592 = vunpack.c.l.s4 1934713408
        %v1593 = vunpack.c.0.s8 %v1592
        %v1594 = vlaneseq
        %v1595 = vshrl.u32 %v1594, 7
        %v1596 = vsub.s32 %v1593, %v1595
        %v1597 = vrot.slane %v1589, %v1596
        %v1599 = vunpack.c.l.s4 1934713408
        %v1600 = vunpack.c.0.s8 %v1599
        %v1601 = vlaneseq
        %v1602 = vshrl.u32 %v1601, 7
        %v1603 = vsub.s32 %v1600, %v1602
        %v1604 = vrot.slane %v1590, %v1603
        %v1605 = vcombine.low %v1540, %v1556
        %v1606 = vcombine.high %v1540, %v1556
        %v1608 = vunpack.c.l.s4 1934713408
        %v1609 = vunpack.c.0.s8 %v1608
        %v1610 = vlaneseq
        %v1611 = vshrl.u32 %v1610, 7
        %v1612 = vsub.s32 %v1609, %v1611
        %v1613 = vrot.slane %v1605, %v1612
        %v1615 = vunpack.c.l.s4 1934713408
        %v1616 = vunpack.c.0.s8 %v1615
        %v1617 = vlaneseq
        %v1618 = vshrl.u32 %v1617, 7
        %v1619 = vsub.s32 %v1616, %v1618
        %v1620 = vrot.slane %v1606, %v1619
        %v1621 = vcombine.low %v1565, %v1581
        %v1622 = vcombine.high %v1565, %v1581
        %v1624 = vunpack.c.l.s4 1934713408
        %v1625 = vunpack.c.0.s8 %v1624
        %v1626 = vlaneseq
        %v1627 = vshrl.u32 %v1626, 7
        %v1628 = vsub.s32 %v1625, %v1627
        %v1629 = vrot.slane %v1621, %v1628
        %v1631 = vunpack.c.l.s4 1934713408
        %v1632 = vunpack.c.0.s8 %v1631
        %v1633 = vlaneseq
        %v1634 = vshrl.u32 %v1633, 7
        %v1635 = vsub.s32 %v1632, %v1634
        %v1636 = vrot.slane %v1622, %v1635
        %v1637 = vcombine.low %v1572, %v1588
        %v1638 = vcombine.high %v1572, %v1588
        %v1640 = vunpack.c.l.s4 1934713408
        %v1641 = vunpack.c.0.s8 %v1640
        %v1642 = vlaneseq
        %v1643 = vshrl.u32 %v1642, 7
        %v1644 = vsub.s32 %v1641, %v1643
        %v1645 = vrot.slane %v1637, %v1644
        %v1647 = vunpack.c.l.s4 1934713408
        %v1648 = vunpack.c.0.s8 %v1647
        %v1649 = vlaneseq
        %v1650 = vshrl.u32 %v1649, 7
        %v1651 = vsub.s32 %v1648, %v1650
        %v1652 = vrot.slane %v1638, %v1651
        %v1653 = vcombine.low %v1597, %v1629
        %v1654 = vcombine.high %v1597, %v1629
        %v1655 = vcombine.low %v1604, %v1636
        %v1656 = vcombine.high %v1604, %v1636
        %v1657 = vcombine.low %v1613, %v1645
        %v1658 = vcombine.high %v1613, %v1645
        %v1659 = vcombine.low %v1620, %v1652
        %v1660 = vcombine.high %v1620, %v1652
        %v1661 = vcombine.low %v754, %v1220
        %v1662 = vcombine.high %v754, %v1220
        %v1664 = vunpack.c.l.s4 1983009808
        %v1665 = vunpack.c.0.s8 %v1664
        %v1666 = vlaneseq
        %v1667 = vshrl.u32 %v1666, 7
        %v1668 = vsub.s32 %v1665, %v1667
        %v1669 = vrot.slane %v1661, %v1668
        %v1671 = vunpack.c.l.s4 1983009808
        %v1672 = vunpack.c.0.s8 %v1671
        %v1673 = vlaneseq
        %v1674 = vshrl.u32 %v1673, 7
        %v1675 = vsub.s32 %v1672, %v1674
        %v1676 = vrot.slane %v1662, %v1675
        %v1677 = vcombine.low %v1214, %v1226
        %v1678 = vcombine.high %v1214, %v1226
        %v1680 = vunpack.c.l.s4 1983009808
        %v1681 = vunpack.c.0.s8 %v1680
        %v1682 = vlaneseq
        %v1683 = vshrl.u32 %v1682, 7
        %v1684 = vsub.s32 %v1681, %v1683
        %v1685 = vrot.slane %v1677, %v1684
        %v1687 = vunpack.c.l.s4 1983009808
        %v1688 = vunpack.c.0.s8 %v1687
        %v1689 = vlaneseq
        %v1690 = vshrl.u32 %v1689, 7
        %v1691 = vsub.s32 %v1688, %v1690
        %v1692 = vrot.slane %v1678, %v1691
        %v1693 = vcombine.low %v1232, %v1244
        %v1694 = vcombine.high %v1232, %v1244
        %v1696 = vunpack.c.l.s4 1983009808
        %v1697 = vunpack.c.0.s8 %v1696
        %v1698 = vlaneseq
        %v1699 = vshrl.u32 %v1698, 7
        %v1700 = vsub.s32 %v1697, %v1699
        %v1701 = vrot.slane %v1693, %v1700
        %v1703 = vunpack.c.l.s4 1983009808
        %v1704 = vunpack.c.0.s8 %v1703
        %v1705 = vlaneseq
        %v1706 = vshrl.u32 %v1705, 7
        %v1707 = vsub.s32 %v1704, %v1706
        %v1708 = vrot.slane %v1694, %v1707
        %v1709 = vcombine.low %v1238, %v1250
        %v1710 = vcombine.high %v1238, %v1250
        %v1712 = vunpack.c.l.s4 1983009808
        %v1713 = vunpack.c.0.s8 %v1712
        %v1714 = vlaneseq
        %v1715 = vshrl.u32 %v1714, 7
        %v1716 = vsub.s32 %v1713, %v1715
        %v1717 = vrot.slane %v1709, %v1716
        %v1719 = vunpack.c.l.s4 1983009808
        %v1720 = vunpack.c.0.s8 %v1719
        %v1721 = vlaneseq
        %v1722 = vshrl.u32 %v1721, 7
        %v1723 = vsub.s32 %v1720, %v1722
        %v1724 = vrot.slane %v1710, %v1723
        %v1725 = vcombine.low %v1669, %v1685
        %v1726 = vcombine.high %v1669, %v1685
        %v1728 = vunpack.c.l.s4 1934713408
        %v1729 = vunpack.c.0.s8 %v1728
        %v1730 = vlaneseq
        %v1731 = vshrl.u32 %v1730, 7
        %v1732 = vsub.s32 %v1729, %v1731
        %v1733 = vrot.slane %v1725, %v1732
        %v1735 = vunpack.c.l.s4 1934713408
        %v1736 = vunpack.c.0.s8 %v1735
        %v1737 = vlaneseq
        %v1738 = vshrl.u32 %v1737, 7
        %v1739 = vsub.s32 %v1736, %v1738
        %v1740 = vrot.slane %v1726, %v1739
        %v1741 = vcombine.low %v1676, %v1692
        %v1742 = vcombine.high %v1676, %v1692
        %v1744 = vunpack.c.l.s4 1934713408
        %v1745 = vunpack.c.0.s8 %v1744
        %v1746 = vlaneseq
        %v1747 = vshrl.u32 %v1746, 7
        %v1748 = vsub.s32 %v1745, %v1747
        %v1749 = vrot.slane %v1741, %v1748
        %v1751 = vunpack.c.l.s4 1934713408
        %v1752 = vunpack.c.0.s8 %v1751
        %v1753 = vlaneseq
        %v1754 = vshrl.u32 %v1753, 7
        %v1755 = vsub.s32 %v1752, %v1754
        %v1756 = vrot.slane %v1742, %v1755
        %v1757 = vcombine.low %v1701, %v1717
        %v1758 = vcombine.high %v1701, %v1717
        %v1760 = vunpack.c.l.s4 1934713408
        %v1761 = vunpack.c.0.s8 %v1760
        %v1762 = vlaneseq
        %v1763 = vshrl.u32 %v1762, 7
        %v1764 = vsub.s32 %v1761, %v1763
        %v1765 = vrot.slane %v1757, %v1764
        %v1767 = vunpack.c.l.s4 1934713408
        %v1768 = vunpack.c.0.s8 %v1767
        %v1769 = vlaneseq
        %v1770 = vshrl.u32 %v1769, 7
        %v1771 = vsub.s32 %v1768, %v1770
        %v1772 = vrot.slane %v1758, %v1771
        %v1773 = vcombine.low %v1708, %v1724
        %v1774 = vcombine.high %v1708, %v1724
        %v1776 = vunpack.c.l.s4 1934713408
        %v1777 = vunpack.c.0.s8 %v1776
        %v1778 = vlaneseq
        %v1779 = vshrl.u32 %v1778, 7
        %v1780 = vsub.s32 %v1777, %v1779
        %v1781 = vrot.slane %v1773, %v1780
        %v1783 = vunpack.c.l.s4 1934713408
        %v1784 = vunpack.c.0.s8 %v1783
        %v1785 = vlaneseq
        %v1786 = vshrl.u32 %v1785, 7
        %v1787 = vsub.s32 %v1784, %v1786
        %v1788 = vrot.slane %v1774, %v1787
        %v1789 = vcombine.low %v1733, %v1765
        %v1790 = vcombine.high %v1733, %v1765
        %v1791 = vcombine.low %v1740, %v1772
        %v1792 = vcombine.high %v1740, %v1772
        %v1793 = vcombine.low %v1749, %v1781
        %v1794 = vcombine.high %v1749, %v1781
        %v1795 = vcombine.low %v1756, %v1788
        %v1796 = vcombine.high %v1756, %v1788
        %v1798 = vsel %vm563, %v1021, 0
        %1800 = vmatprep.subr.mxu0 0.0
        %1801 = vmatpush1.msra.mxu0 %v1381
        %1802 = vmatprep.subr.mxu0 0.0
        %1803 = vmatpush1.msra.mxu0 %v1517
        %1804 = vmatprep.subr.mxu0 0.0
        %1805 = vmatpush1.msra.mxu0 0.0
        %1806 = vmatprep.subr.mxu0 0.0
        %1807 = vmatpush1.msra.mxu0 0.0
        %1808 = vmatprep.subr.mxu0 0.0
        %1809 = vmatpush1.msra.mxu0 0.0
        %1810 = vmatprep.subr.mxu0 0.0
        %1811 = vmatpush1.msra.mxu0 0.0
        %1812 = vmatprep.subr.mxu0 0.0
        %1813 = vmatpush1.msra.mxu0 0.0
        %1814 = vmatprep.subr.mxu0 0.0
        %1815 = vmatpush1.msra.mxu0 0.0
        %1816 = vmatprep.subr.mxu0 0.0
        %1817 = vmatpush1.msra.mxu0 0.0
        %1818 = vmatprep.subr.mxu0 0.0
        %1819 = vmatpush1.msra.mxu0 0.0
        %1820 = vmatprep.subr.mxu0 0.0
        %1821 = vmatpush1.msra.mxu0 0.0
        %1822 = vmatprep.subr.mxu0 0.0
        %1823 = vmatpush1.msra.mxu0 0.0
        %1824 = vmatprep.subr.mxu0 0.0
        %1825 = vmatpush1.msra.mxu0 0.0
        %1826 = vmatprep.subr.mxu0 0.0
        %1827 = vmatpush1.msra.mxu0 0.0
        %1828 = vmatprep.subr.mxu0 0.0
        %1829 = vmatpush1.msra.mxu0 0.0
        %1830 = vmatprep.subr.mxu0 0.0
        %1831 = vmatpush1.msra.mxu0 0.0
        %1832 = vmatprep.subr.mxu0 0.0
        %1833 = vmatpush1.msra.mxu0 0.0
        %1834 = vmatprep.subr.mxu0 0.0
        %1835 = vmatpush1.msra.mxu0 0.0
        %1836 = vmatprep.subr.mxu0 0.0
        %1837 = vmatpush1.msra.mxu0 0.0
        %1838 = vmatprep.subr.mxu0 0.0
        %1839 = vmatpush1.msra.mxu0 0.0
        %1840 = vmatprep.subr.mxu0 0.0
        %1841 = vmatpush1.msra.mxu0 0.0
        %1842 = vmatprep.subr.mxu0 0.0
        %1843 = vmatpush1.msra.mxu0 0.0
        %1844 = vmatprep.subr.mxu0 0.0
        %1845 = vmatpush1.msra.mxu0 0.0
        %1846 = vmatprep.subr.mxu0 0.0
        %1847 = vmatpush1.msra.mxu0 0.0
        %1848 = vmatprep.subr.mxu0 0.0
        %1849 = vmatpush1.msra.mxu0 0.0
        %1850 = vmatprep.subr.mxu0 0.0
        %1851 = vmatpush1.msra.mxu0 0.0
        %1852 = vmatprep.subr.mxu0 0.0
        %1853 = vmatpush1.msra.mxu0 0.0
        %1854 = vmatprep.subr.mxu0 0.0
        %1855 = vmatpush1.msra.mxu0 0.0
        %1856 = vmatprep.subr.mxu0 0.0
        %1857 = vmatpush1.msra.mxu0 0.0
        %1858 = vmatprep.subr.mxu0 0.0
        %1859 = vmatpush1.msra.mxu0 0.0
        %1860 = vmatprep.subr.mxu0 0.0
        %1861 = vmatpush1.msra.mxu0 0.0
        %1862 = vmatprep.subr.mxu0 0.0
        %1863 = vmatpush1.msra.mxu0 0.0
        %1864 = vmatprep.mubr.f32.mxu0 0.0
        %1865 = vmatmul.mubr.f32.gmra.mrb[0].mxu0 %v1798
        %v1866 = vpop.f32.mrb[0].mxu0
        %v1867 = vadd.f32 0.0, %v1866
        %v1868 = vpop.f32.mrb[0].mxu0
        %1869 = vdwg.mxu0
        %v1871 = vsel %vm563, %v1022, 0
        %1873 = vmatprep.subr.mxu0 0.0
        %1874 = vmatpush1.msra.mxu0 %v1382
        %1875 = vmatprep.subr.mxu0 0.0
        %1876 = vmatpush1.msra.mxu0 %v1518
        %1877 = vmatprep.subr.mxu0 0.0
        %1878 = vmatpush1.msra.mxu0 0.0
        %1879 = vmatprep.subr.mxu0 0.0
        %1880 = vmatpush1.msra.mxu0 0.0
        %1881 = vmatprep.subr.mxu0 0.0
        %1882 = vmatpush1.msra.mxu0 0.0
        %1883 = vmatprep.subr.mxu0 0.0
        %1884 = vmatpush1.msra.mxu0 0.0
        %1885 = vmatprep.subr.mxu0 0.0
        %1886 = vmatpush1.msra.mxu0 0.0
        %1887 = vmatprep.subr.mxu0 0.0
        %1888 = vmatpush1.msra.mxu0 0.0
        %1889 = vmatprep.subr.mxu0 0.0
        %1890 = vmatpush1.msra.mxu0 0.0
        %1891 = vmatprep.subr.mxu0 0.0
        %1892 = vmatpush1.msra.mxu0 0.0
        %1893 = vmatprep.subr.mxu0 0.0
        %1894 = vmatpush1.msra.mxu0 0.0
        %1895 = vmatprep.subr.mxu0 0.0
        %1896 = vmatpush1.msra.mxu0 0.0
        %1897 = vmatprep.subr.mxu0 0.0
        %1898 = vmatpush1.msra.mxu0 0.0
        %1899 = vmatprep.subr.mxu0 0.0
        %1900 = vmatpush1.msra.mxu0 0.0
        %1901 = vmatprep.subr.mxu0 0.0
        %1902 = vmatpush1.msra.mxu0 0.0
        %1903 = vmatprep.subr.mxu0 0.0
        %1904 = vmatpush1.msra.mxu0 0.0
        %1905 = vmatprep.subr.mxu0 0.0
        %1906 = vmatpush1.msra.mxu0 0.0
        %1907 = vmatprep.subr.mxu0 0.0
        %1908 = vmatpush1.msra.mxu0 0.0
        %1909 = vmatprep.subr.mxu0 0.0
        %1910 = vmatpush1.msra.mxu0 0.0
        %1911 = vmatprep.subr.mxu0 0.0
        %1912 = vmatpush1.msra.mxu0 0.0
        %1913 = vmatprep.subr.mxu0 0.0
        %1914 = vmatpush1.msra.mxu0 0.0
        %1915 = vmatprep.subr.mxu0 0.0
        %1916 = vmatpush1.msra.mxu0 0.0
        %1917 = vmatprep.subr.mxu0 0.0
        %1918 = vmatpush1.msra.mxu0 0.0
        %1919 = vmatprep.subr.mxu0 0.0
        %1920 = vmatpush1.msra.mxu0 0.0
        %1921 = vmatprep.subr.mxu0 0.0
        %1922 = vmatpush1.msra.mxu0 0.0
        %1923 = vmatprep.subr.mxu0 0.0
        %1924 = vmatpush1.msra.mxu0 0.0
        %1925 = vmatprep.subr.mxu0 0.0
        %1926 = vmatpush1.msra.mxu0 0.0
        %1927 = vmatprep.subr.mxu0 0.0
        %1928 = vmatpush1.msra.mxu0 0.0
        %1929 = vmatprep.subr.mxu0 0.0
        %1930 = vmatpush1.msra.mxu0 0.0
        %1931 = vmatprep.subr.mxu0 0.0
        %1932 = vmatpush1.msra.mxu0 0.0
        %1933 = vmatprep.subr.mxu0 0.0
        %1934 = vmatpush1.msra.mxu0 0.0
        %1935 = vmatprep.subr.mxu0 0.0
        %1936 = vmatpush1.msra.mxu0 0.0
        %1937 = vmatprep.mubr.f32.mxu0 0.0
        %1938 = vmatmul.mubr.f32.gmra.mrb[0].mxu0 %v1871
        %v1939 = vpop.f32.mrb[0].mxu0
        %v1940 = vadd.f32 0.0, %v1939
        %v1941 = vpop.f32.mrb[0].mxu0
        %1942 = vdwg.mxu0
        %v1944 = vsel %vm563, %v1023, 0
        %1946 = vmatprep.subr.mxu0 0.0
        %1947 = vmatpush1.msra.mxu0 %v1383
        %1948 = vmatprep.subr.mxu0 0.0
        %1949 = vmatpush1.msra.mxu0 %v1519
        %1950 = vmatprep.subr.mxu0 0.0
        %1951 = vmatpush1.msra.mxu0 0.0
        %1952 = vmatprep.subr.mxu0 0.0
        %1953 = vmatpush1.msra.mxu0 0.0
        %1954 = vmatprep.subr.mxu0 0.0
        %1955 = vmatpush1.msra.mxu0 0.0
        %1956 = vmatprep.subr.mxu0 0.0
        %1957 = vmatpush1.msra.mxu0 0.0
        %1958 = vmatprep.subr.mxu0 0.0
        %1959 = vmatpush1.msra.mxu0 0.0
        %1960 = vmatprep.subr.mxu0 0.0
        %1961 = vmatpush1.msra.mxu0 0.0
        %1962 = vmatprep.subr.mxu0 0.0
        %1963 = vmatpush1.msra.mxu0 0.0
        %1964 = vmatprep.subr.mxu0 0.0
        %1965 = vmatpush1.msra.mxu0 0.0
        %1966 = vmatprep.subr.mxu0 0.0
        %1967 = vmatpush1.msra.mxu0 0.0
        %1968 = vmatprep.subr.mxu0 0.0
        %1969 = vmatpush1.msra.mxu0 0.0
        %1970 = vmatprep.subr.mxu0 0.0
        %1971 = vmatpush1.msra.mxu0 0.0
        %1972 = vmatprep.subr.mxu0 0.0
        %1973 = vmatpush1.msra.mxu0 0.0
        %1974 = vmatprep.subr.mxu0 0.0
        %1975 = vmatpush1.msra.mxu0 0.0
        %1976 = vmatprep.subr.mxu0 0.0
        %1977 = vmatpush1.msra.mxu0 0.0
        %1978 = vmatprep.subr.mxu0 0.0
        %1979 = vmatpush1.msra.mxu0 0.0
        %1980 = vmatprep.subr.mxu0 0.0
        %1981 = vmatpush1.msra.mxu0 0.0
        %1982 = vmatprep.subr.mxu0 0.0
        %1983 = vmatpush1.msra.mxu0 0.0
        %1984 = vmatprep.subr.mxu0 0.0
        %1985 = vmatpush1.msra.mxu0 0.0
        %1986 = vmatprep.subr.mxu0 0.0
        %1987 = vmatpush1.msra.mxu0 0.0
        %1988 = vmatprep.subr.mxu0 0.0
        %1989 = vmatpush1.msra.mxu0 0.0
        %1990 = vmatprep.subr.mxu0 0.0
        %1991 = vmatpush1.msra.mxu0 0.0
        %1992 = vmatprep.subr.mxu0 0.0
        %1993 = vmatpush1.msra.mxu0 0.0
        %1994 = vmatprep.subr.mxu0 0.0
        %1995 = vmatpush1.msra.mxu0 0.0
        %1996 = vmatprep.subr.mxu0 0.0
        %1997 = vmatpush1.msra.mxu0 0.0
        %1998 = vmatprep.subr.mxu0 0.0
        %1999 = vmatpush1.msra.mxu0 0.0
        %2000 = vmatprep.subr.mxu0 0.0
        %2001 = vmatpush1.msra.mxu0 0.0
        %2002 = vmatprep.subr.mxu0 0.0
        %2003 = vmatpush1.msra.mxu0 0.0
        %2004 = vmatprep.subr.mxu0 0.0
        %2005 = vmatpush1.msra.mxu0 0.0
        %2006 = vmatprep.subr.mxu0 0.0
        %2007 = vmatpush1.msra.mxu0 0.0
        %2008 = vmatprep.subr.mxu0 0.0
        %2009 = vmatpush1.msra.mxu0 0.0
        %2010 = vmatprep.mubr.f32.mxu0 0.0
        %2011 = vmatmul.mubr.f32.gmra.mrb[0].mxu0 %v1944
        %v2012 = vpop.f32.mrb[0].mxu0
        %v2013 = vadd.f32 0.0, %v2012
        %v2014 = vpop.f32.mrb[0].mxu0
        %2015 = vdwg.mxu0
        %v2017 = vsel %vm563, %v1024, 0
        %2019 = vmatprep.subr.mxu0 0.0
        %2020 = vmatpush1.msra.mxu0 %v1384
        %2021 = vmatprep.subr.mxu0 0.0
        %2022 = vmatpush1.msra.mxu0 %v1520
        %2023 = vmatprep.subr.mxu0 0.0
        %2024 = vmatpush1.msra.mxu0 0.0
        %2025 = vmatprep.subr.mxu0 0.0
        %2026 = vmatpush1.msra.mxu0 0.0
        %2027 = vmatprep.subr.mxu0 0.0
        %2028 = vmatpush1.msra.mxu0 0.0
        %2029 = vmatprep.subr.mxu0 0.0
        %2030 = vmatpush1.msra.mxu0 0.0
        %2031 = vmatprep.subr.mxu0 0.0
        %2032 = vmatpush1.msra.mxu0 0.0
        %2033 = vmatprep.subr.mxu0 0.0
        %2034 = vmatpush1.msra.mxu0 0.0
        %2035 = vmatprep.subr.mxu0 0.0
        %2036 = vmatpush1.msra.mxu0 0.0
        %2037 = vmatprep.subr.mxu0 0.0
        %2038 = vmatpush1.msra.mxu0 0.0
        %2039 = vmatprep.subr.mxu0 0.0
        %2040 = vmatpush1.msra.mxu0 0.0
        %2041 = vmatprep.subr.mxu0 0.0
        %2042 = vmatpush1.msra.mxu0 0.0
        %2043 = vmatprep.subr.mxu0 0.0
        %2044 = vmatpush1.msra.mxu0 0.0
        %2045 = vmatprep.subr.mxu0 0.0
        %2046 = vmatpush1.msra.mxu0 0.0
        %2047 = vmatprep.subr.mxu0 0.0
        %2048 = vmatpush1.msra.mxu0 0.0
        %2049 = vmatprep.subr.mxu0 0.0
        %2050 = vmatpush1.msra.mxu0 0.0
        %2051 = vmatprep.subr.mxu0 0.0
        %2052 = vmatpush1.msra.mxu0 0.0
        %2053 = vmatprep.subr.mxu0 0.0
        %2054 = vmatpush1.msra.mxu0 0.0
        %2055 = vmatprep.subr.mxu0 0.0
        %2056 = vmatpush1.msra.mxu0 0.0
        %2057 = vmatprep.subr.mxu0 0.0
        %2058 = vmatpush1.msra.mxu0 0.0
        %2059 = vmatprep.subr.mxu0 0.0
        %2060 = vmatpush1.msra.mxu0 0.0
        %2061 = vmatprep.subr.mxu0 0.0
        %2062 = vmatpush1.msra.mxu0 0.0
        %2063 = vmatprep.subr.mxu0 0.0
        %2064 = vmatpush1.msra.mxu0 0.0
        %2065 = vmatprep.subr.mxu0 0.0
        %2066 = vmatpush1.msra.mxu0 0.0
        %2067 = vmatprep.subr.mxu0 0.0
        %2068 = vmatpush1.msra.mxu0 0.0
        %2069 = vmatprep.subr.mxu0 0.0
        %2070 = vmatpush1.msra.mxu0 0.0
        %2071 = vmatprep.subr.mxu0 0.0
        %2072 = vmatpush1.msra.mxu0 0.0
        %2073 = vmatprep.subr.mxu0 0.0
        %2074 = vmatpush1.msra.mxu0 0.0
        %2075 = vmatprep.subr.mxu0 0.0
        %2076 = vmatpush1.msra.mxu0 0.0
        %2077 = vmatprep.subr.mxu0 0.0
        %2078 = vmatpush1.msra.mxu0 0.0
        %2079 = vmatprep.subr.mxu0 0.0
        %2080 = vmatpush1.msra.mxu0 0.0
        %2081 = vmatprep.subr.mxu0 0.0
        %2082 = vmatpush1.msra.mxu0 0.0
        %2083 = vmatprep.mubr.f32.mxu0 0.0
        %2084 = vmatmul.mubr.f32.gmra.mrb[0].mxu0 %v2017
        %v2085 = vpop.f32.mrb[0].mxu0
        %v2086 = vadd.f32 0.0, %v2085
        %v2087 = vpop.f32.mrb[0].mxu0
        %2088 = vdwg.mxu0
        %v2090 = vsel %vm563, %v1025, 0
        %2092 = vmatprep.subr.mxu0 0.0
        %2093 = vmatpush1.msra.mxu0 %v1385
        %2094 = vmatprep.subr.mxu0 0.0
        %2095 = vmatpush1.msra.mxu0 %v1521
        %2096 = vmatprep.subr.mxu0 0.0
        %2097 = vmatpush1.msra.mxu0 0.0
        %2098 = vmatprep.subr.mxu0 0.0
        %2099 = vmatpush1.msra.mxu0 0.0
        %2100 = vmatprep.subr.mxu0 0.0
        %2101 = vmatpush1.msra.mxu0 0.0
        %2102 = vmatprep.subr.mxu0 0.0
        %2103 = vmatpush1.msra.mxu0 0.0
        %2104 = vmatprep.subr.mxu0 0.0
        %2105 = vmatpush1.msra.mxu0 0.0
        %2106 = vmatprep.subr.mxu0 0.0
        %2107 = vmatpush1.msra.mxu0 0.0
        %2108 = vmatprep.subr.mxu0 0.0
        %2109 = vmatpush1.msra.mxu0 0.0
        %2110 = vmatprep.subr.mxu0 0.0
        %2111 = vmatpush1.msra.mxu0 0.0
        %2112 = vmatprep.subr.mxu0 0.0
        %2113 = vmatpush1.msra.mxu0 0.0
        %2114 = vmatprep.subr.mxu0 0.0
        %2115 = vmatpush1.msra.mxu0 0.0
        %2116 = vmatprep.subr.mxu0 0.0
        %2117 = vmatpush1.msra.mxu0 0.0
        %2118 = vmatprep.subr.mxu0 0.0
        %2119 = vmatpush1.msra.mxu0 0.0
        %2120 = vmatprep.subr.mxu0 0.0
        %2121 = vmatpush1.msra.mxu0 0.0
        %2122 = vmatprep.subr.mxu0 0.0
        %2123 = vmatpush1.msra.mxu0 0.0
        %2124 = vmatprep.subr.mxu0 0.0
        %2125 = vmatpush1.msra.mxu0 0.0
        %2126 = vmatprep.subr.mxu0 0.0
        %2127 = vmatpush1.msra.mxu0 0.0
        %2128 = vmatprep.subr.mxu0 0.0
        %2129 = vmatpush1.msra.mxu0 0.0
        %2130 = vmatprep.subr.mxu0 0.0
        %2131 = vmatpush1.msra.mxu0 0.0
        %2132 = vmatprep.subr.mxu0 0.0
        %2133 = vmatpush1.msra.mxu0 0.0
        %2134 = vmatprep.subr.mxu0 0.0
        %2135 = vmatpush1.msra.mxu0 0.0
        %2136 = vmatprep.subr.mxu0 0.0
        %2137 = vmatpush1.msra.mxu0 0.0
        %2138 = vmatprep.subr.mxu0 0.0
        %2139 = vmatpush1.msra.mxu0 0.0
        %2140 = vmatprep.subr.mxu0 0.0
        %2141 = vmatpush1.msra.mxu0 0.0
        %2142 = vmatprep.subr.mxu0 0.0
        %2143 = vmatpush1.msra.mxu0 0.0
        %2144 = vmatprep.subr.mxu0 0.0
        %2145 = vmatpush1.msra.mxu0 0.0
        %2146 = vmatprep.subr.mxu0 0.0
        %2147 = vmatpush1.msra.mxu0 0.0
        %2148 = vmatprep.subr.mxu0 0.0
        %2149 = vmatpush1.msra.mxu0 0.0
        %2150 = vmatprep.subr.mxu0 0.0
        %2151 = vmatpush1.msra.mxu0 0.0
        %2152 = vmatprep.subr.mxu0 0.0
        %2153 = vmatpush1.msra.mxu0 0.0
        %2154 = vmatprep.subr.mxu0 0.0
        %2155 = vmatpush1.msra.mxu0 0.0
        %2156 = vmatprep.mubr.f32.mxu0 0.0
        %2157 = vmatmul.mubr.f32.gmra.mrb[0].mxu0 %v2090
        %v2158 = vpop.f32.mrb[0].mxu0
        %v2159 = vadd.f32 0.0, %v2158
        %v2160 = vpop.f32.mrb[0].mxu0
        %2161 = vdwg.mxu0
        %v2163 = vsel %vm563, %v1026, 0
        %2165 = vmatprep.subr.mxu0 0.0
        %2166 = vmatpush1.msra.mxu0 %v1386
        %2167 = vmatprep.subr.mxu0 0.0
        %2168 = vmatpush1.msra.mxu0 %v1522
        %2169 = vmatprep.subr.mxu0 0.0
        %2170 = vmatpush1.msra.mxu0 0.0
        %2171 = vmatprep.subr.mxu0 0.0
        %2172 = vmatpush1.msra.mxu0 0.0
        %2173 = vmatprep.subr.mxu0 0.0
        %2174 = vmatpush1.msra.mxu0 0.0
        %2175 = vmatprep.subr.mxu0 0.0
        %2176 = vmatpush1.msra.mxu0 0.0
        %2177 = vmatprep.subr.mxu0 0.0
        %2178 = vmatpush1.msra.mxu0 0.0
        %2179 = vmatprep.subr.mxu0 0.0
        %2180 = vmatpush1.msra.mxu0 0.0
        %2181 = vmatprep.subr.mxu0 0.0
        %2182 = vmatpush1.msra.mxu0 0.0
        %2183 = vmatprep.subr.mxu0 0.0
        %2184 = vmatpush1.msra.mxu0 0.0
        %2185 = vmatprep.subr.mxu0 0.0
        %2186 = vmatpush1.msra.mxu0 0.0
        %2187 = vmatprep.subr.mxu0 0.0
        %2188 = vmatpush1.msra.mxu0 0.0
        %2189 = vmatprep.subr.mxu0 0.0
        %2190 = vmatpush1.msra.mxu0 0.0
        %2191 = vmatprep.subr.mxu0 0.0
        %2192 = vmatpush1.msra.mxu0 0.0
        %2193 = vmatprep.subr.mxu0 0.0
        %2194 = vmatpush1.msra.mxu0 0.0
        %2195 = vmatprep.subr.mxu0 0.0
        %2196 = vmatpush1.msra.mxu0 0.0
        %2197 = vmatprep.subr.mxu0 0.0
        %2198 = vmatpush1.msra.mxu0 0.0
        %2199 = vmatprep.subr.mxu0 0.0
        %2200 = vmatpush1.msra.mxu0 0.0
        %2201 = vmatprep.subr.mxu0 0.0
        %2202 = vmatpush1.msra.mxu0 0.0
        %2203 = vmatprep.subr.mxu0 0.0
        %2204 = vmatpush1.msra.mxu0 0.0
        %2205 = vmatprep.subr.mxu0 0.0
        %2206 = vmatpush1.msra.mxu0 0.0
        %2207 = vmatprep.subr.mxu0 0.0
        %2208 = vmatpush1.msra.mxu0 0.0
        %2209 = vmatprep.subr.mxu0 0.0
        %2210 = vmatpush1.msra.mxu0 0.0
        %2211 = vmatprep.subr.mxu0 0.0
        %2212 = vmatpush1.msra.mxu0 0.0
        %2213 = vmatprep.subr.mxu0 0.0
        %2214 = vmatpush1.msra.mxu0 0.0
        %2215 = vmatprep.subr.mxu0 0.0
        %2216 = vmatpush1.msra.mxu0 0.0
        %2217 = vmatprep.subr.mxu0 0.0
        %2218 = vmatpush1.msra.mxu0 0.0
        %2219 = vmatprep.subr.mxu0 0.0
        %2220 = vmatpush1.msra.mxu0 0.0
        %2221 = vmatprep.subr.mxu0 0.0
        %2222 = vmatpush1.msra.mxu0 0.0
        %2223 = vmatprep.subr.mxu0 0.0
        %2224 = vmatpush1.msra.mxu0 0.0
        %2225 = vmatprep.subr.mxu0 0.0
        %2226 = vmatpush1.msra.mxu0 0.0
        %2227 = vmatprep.subr.mxu0 0.0
        %2228 = vmatpush1.msra.mxu0 0.0
        %2229 = vmatprep.mubr.f32.mxu0 0.0
        %2230 = vmatmul.mubr.f32.gmra.mrb[0].mxu0 %v2163
        %v2231 = vpop.f32.mrb[0].mxu0
        %v2232 = vadd.f32 0.0, %v2231
        %v2233 = vpop.f32.mrb[0].mxu0
        %2234 = vdwg.mxu0
        %v2236 = vsel %vm563, %v1027, 0
        %2238 = vmatprep.subr.mxu0 0.0
        %2239 = vmatpush1.msra.mxu0 %v1387
        %2240 = vmatprep.subr.mxu0 0.0
        %2241 = vmatpush1.msra.mxu0 %v1523
        %2242 = vmatprep.subr.mxu0 0.0
        %2243 = vmatpush1.msra.mxu0 0.0
        %2244 = vmatprep.subr.mxu0 0.0
        %2245 = vmatpush1.msra.mxu0 0.0
        %2246 = vmatprep.subr.mxu0 0.0
        %2247 = vmatpush1.msra.mxu0 0.0
        %2248 = vmatprep.subr.mxu0 0.0
        %2249 = vmatpush1.msra.mxu0 0.0
        %2250 = vmatprep.subr.mxu0 0.0
        %2251 = vmatpush1.msra.mxu0 0.0
        %2252 = vmatprep.subr.mxu0 0.0
        %2253 = vmatpush1.msra.mxu0 0.0
        %2254 = vmatprep.subr.mxu0 0.0
        %2255 = vmatpush1.msra.mxu0 0.0
        %2256 = vmatprep.subr.mxu0 0.0
        %2257 = vmatpush1.msra.mxu0 0.0
        %2258 = vmatprep.subr.mxu0 0.0
        %2259 = vmatpush1.msra.mxu0 0.0
        %2260 = vmatprep.subr.mxu0 0.0
        %2261 = vmatpush1.msra.mxu0 0.0
        %2262 = vmatprep.subr.mxu0 0.0
        %2263 = vmatpush1.msra.mxu0 0.0
        %2264 = vmatprep.subr.mxu0 0.0
        %2265 = vmatpush1.msra.mxu0 0.0
        %2266 = vmatprep.subr.mxu0 0.0
        %2267 = vmatpush1.msra.mxu0 0.0
        %2268 = vmatprep.subr.mxu0 0.0
        %2269 = vmatpush1.msra.mxu0 0.0
        %2270 = vmatprep.subr.mxu0 0.0
        %2271 = vmatpush1.msra.mxu0 0.0
        %2272 = vmatprep.subr.mxu0 0.0
        %2273 = vmatpush1.msra.mxu0 0.0
        %2274 = vmatprep.subr.mxu0 0.0
        %2275 = vmatpush1.msra.mxu0 0.0
        %2276 = vmatprep.subr.mxu0 0.0
        %2277 = vmatpush1.msra.mxu0 0.0
        %2278 = vmatprep.subr.mxu0 0.0
        %2279 = vmatpush1.msra.mxu0 0.0
        %2280 = vmatprep.subr.mxu0 0.0
        %2281 = vmatpush1.msra.mxu0 0.0
        %2282 = vmatprep.subr.mxu0 0.0
        %2283 = vmatpush1.msra.mxu0 0.0
        %2284 = vmatprep.subr.mxu0 0.0
        %2285 = vmatpush1.msra.mxu0 0.0
        %2286 = vmatprep.subr.mxu0 0.0
        %2287 = vmatpush1.msra.mxu0 0.0
        %2288 = vmatprep.subr.mxu0 0.0
        %2289 = vmatpush1.msra.mxu0 0.0
        %2290 = vmatprep.subr.mxu0 0.0
        %2291 = vmatpush1.msra.mxu0 0.0
        %2292 = vmatprep.subr.mxu0 0.0
        %2293 = vmatpush1.msra.mxu0 0.0
        %2294 = vmatprep.subr.mxu0 0.0
        %2295 = vmatpush1.msra.mxu0 0.0
        %2296 = vmatprep.subr.mxu0 0.0
        %2297 = vmatpush1.msra.mxu0 0.0
        %2298 = vmatprep.subr.mxu0 0.0
        %2299 = vmatpush1.msra.mxu0 0.0
        %2300 = vmatprep.subr.mxu0 0.0
        %2301 = vmatpush1.msra.mxu0 0.0
        %2302 = vmatprep.mubr.f32.mxu0 0.0
        %2303 = vmatmul.mubr.f32.gmra.mrb[0].mxu0 %v2236
        %v2304 = vpop.f32.mrb[0].mxu0
        %v2305 = vadd.f32 0.0, %v2304
        %v2306 = vpop.f32.mrb[0].mxu0
        %2307 = vdwg.mxu0
        %v2309 = vsel %vm563, %v1028, 0
        %2311 = vmatprep.subr.mxu0 0.0
        %2312 = vmatpush1.msra.mxu0 %v1388
        %2313 = vmatprep.subr.mxu0 0.0
        %2314 = vmatpush1.msra.mxu0 %v1524
        %2315 = vmatprep.subr.mxu0 0.0
        %2316 = vmatpush1.msra.mxu0 0.0
        %2317 = vmatprep.subr.mxu0 0.0
        %2318 = vmatpush1.msra.mxu0 0.0
        %2319 = vmatprep.subr.mxu0 0.0
        %2320 = vmatpush1.msra.mxu0 0.0
        %2321 = vmatprep.subr.mxu0 0.0
        %2322 = vmatpush1.msra.mxu0 0.0
        %2323 = vmatprep.subr.mxu0 0.0
        %2324 = vmatpush1.msra.mxu0 0.0
        %2325 = vmatprep.subr.mxu0 0.0
        %2326 = vmatpush1.msra.mxu0 0.0
        %2327 = vmatprep.subr.mxu0 0.0
        %2328 = vmatpush1.msra.mxu0 0.0
        %2329 = vmatprep.subr.mxu0 0.0
        %2330 = vmatpush1.msra.mxu0 0.0
        %2331 = vmatprep.subr.mxu0 0.0
        %2332 = vmatpush1.msra.mxu0 0.0
        %2333 = vmatprep.subr.mxu0 0.0
        %2334 = vmatpush1.msra.mxu0 0.0
        %2335 = vmatprep.subr.mxu0 0.0
        %2336 = vmatpush1.msra.mxu0 0.0
        %2337 = vmatprep.subr.mxu0 0.0
        %2338 = vmatpush1.msra.mxu0 0.0
        %2339 = vmatprep.subr.mxu0 0.0
        %2340 = vmatpush1.msra.mxu0 0.0
        %2341 = vmatprep.subr.mxu0 0.0
        %2342 = vmatpush1.msra.mxu0 0.0
        %2343 = vmatprep.subr.mxu0 0.0
        %2344 = vmatpush1.msra.mxu0 0.0
        %2345 = vmatprep.subr.mxu0 0.0
        %2346 = vmatpush1.msra.mxu0 0.0
        %2347 = vmatprep.subr.mxu0 0.0
        %2348 = vmatpush1.msra.mxu0 0.0
        %2349 = vmatprep.subr.mxu0 0.0
        %2350 = vmatpush1.msra.mxu0 0.0
        %2351 = vmatprep.subr.mxu0 0.0
        %2352 = vmatpush1.msra.mxu0 0.0
        %2353 = vmatprep.subr.mxu0 0.0
        %2354 = vmatpush1.msra.mxu0 0.0
        %2355 = vmatprep.subr.mxu0 0.0
        %2356 = vmatpush1.msra.mxu0 0.0
        %2357 = vmatprep.subr.mxu0 0.0
        %2358 = vmatpush1.msra.mxu0 0.0
        %2359 = vmatprep.subr.mxu0 0.0
        %2360 = vmatpush1.msra.mxu0 0.0
        %2361 = vmatprep.subr.mxu0 0.0
        %2362 = vmatpush1.msra.mxu0 0.0
        %2363 = vmatprep.subr.mxu0 0.0
        %2364 = vmatpush1.msra.mxu0 0.0
        %2365 = vmatprep.subr.mxu0 0.0
        %2366 = vmatpush1.msra.mxu0 0.0
        %2367 = vmatprep.subr.mxu0 0.0
        %2368 = vmatpush1.msra.mxu0 0.0
        %2369 = vmatprep.subr.mxu0 0.0
        %2370 = vmatpush1.msra.mxu0 0.0
        %2371 = vmatprep.subr.mxu0 0.0
        %2372 = vmatpush1.msra.mxu0 0.0
        %2373 = vmatprep.subr.mxu0 0.0
        %2374 = vmatpush1.msra.mxu0 0.0
        %2375 = vmatprep.mubr.f32.mxu0 0.0
        %2376 = vmatmul.mubr.f32.gmra.mrb[0].mxu0 %v2309
        %v2377 = vpop.f32.mrb[0].mxu0
        %v2378 = vadd.f32 0.0, %v2377
        %v2379 = vpop.f32.mrb[0].mxu0
        %2380 = vdwg.mxu0
        %v2382 = vsel %vm563, %v1157, 0
        %2384 = vmatprep.subr.mxu0 0.0
        %2385 = vmatpush1.msra.mxu0 %v1653
        %2386 = vmatprep.subr.mxu0 0.0
        %2387 = vmatpush1.msra.mxu0 %v1789
        %2388 = vmatprep.subr.mxu0 0.0
        %2389 = vmatpush1.msra.mxu0 0.0
        %2390 = vmatprep.subr.mxu0 0.0
        %2391 = vmatpush1.msra.mxu0 0.0
        %2392 = vmatprep.subr.mxu0 0.0
        %2393 = vmatpush1.msra.mxu0 0.0
        %2394 = vmatprep.subr.mxu0 0.0
        %2395 = vmatpush1.msra.mxu0 0.0
        %2396 = vmatprep.subr.mxu0 0.0
        %2397 = vmatpush1.msra.mxu0 0.0
        %2398 = vmatprep.subr.mxu0 0.0
        %2399 = vmatpush1.msra.mxu0 0.0
        %2400 = vmatprep.subr.mxu0 0.0
        %2401 = vmatpush1.msra.mxu0 0.0
        %2402 = vmatprep.subr.mxu0 0.0
        %2403 = vmatpush1.msra.mxu0 0.0
        %2404 = vmatprep.subr.mxu0 0.0
        %2405 = vmatpush1.msra.mxu0 0.0
        %2406 = vmatprep.subr.mxu0 0.0
        %2407 = vmatpush1.msra.mxu0 0.0
        %2408 = vmatprep.subr.mxu0 0.0
        %2409 = vmatpush1.msra.mxu0 0.0
        %2410 = vmatprep.subr.mxu0 0.0
        %2411 = vmatpush1.msra.mxu0 0.0
        %2412 = vmatprep.subr.mxu0 0.0
        %2413 = vmatpush1.msra.mxu0 0.0
        %2414 = vmatprep.subr.mxu0 0.0
        %2415 = vmatpush1.msra.mxu0 0.0
        %2416 = vmatprep.subr.mxu0 0.0
        %2417 = vmatpush1.msra.mxu0 0.0
        %2418 = vmatprep.subr.mxu0 0.0
        %2419 = vmatpush1.msra.mxu0 0.0
        %2420 = vmatprep.subr.mxu0 0.0
        %2421 = vmatpush1.msra.mxu0 0.0
        %2422 = vmatprep.subr.mxu0 0.0
        %2423 = vmatpush1.msra.mxu0 0.0
        %2424 = vmatprep.subr.mxu0 0.0
        %2425 = vmatpush1.msra.mxu0 0.0
        %2426 = vmatprep.subr.mxu0 0.0
        %2427 = vmatpush1.msra.mxu0 0.0
        %2428 = vmatprep.subr.mxu0 0.0
        %2429 = vmatpush1.msra.mxu0 0.0
        %2430 = vmatprep.subr.mxu0 0.0
        %2431 = vmatpush1.msra.mxu0 0.0
        %2432 = vmatprep.subr.mxu0 0.0
        %2433 = vmatpush1.msra.mxu0 0.0
        %2434 = vmatprep.subr.mxu0 0.0
        %2435 = vmatpush1.msra.mxu0 0.0
        %2436 = vmatprep.subr.mxu0 0.0
        %2437 = vmatpush1.msra.mxu0 0.0
        %2438 = vmatprep.subr.mxu0 0.0
        %2439 = vmatpush1.msra.mxu0 0.0
        %2440 = vmatprep.subr.mxu0 0.0
        %2441 = vmatpush1.msra.mxu0 0.0
        %2442 = vmatprep.subr.mxu0 0.0
        %2443 = vmatpush1.msra.mxu0 0.0
        %2444 = vmatprep.subr.mxu0 0.0
        %2445 = vmatpush1.msra.mxu0 0.0
        %2446 = vmatprep.subr.mxu0 0.0
        %2447 = vmatpush1.msra.mxu0 0.0
        %2448 = vmatprep.mubr.f32.mxu0 0.0
        %2449 = vmatmul.mubr.f32.gmra.mrb[0].mxu0 %v2382
        %v2450 = vpop.f32.mrb[0].mxu0
        %v2451 = vadd.f32 0.0, %v2450
        %v2452 = vpop.f32.mrb[0].mxu0
        %2453 = vdwg.mxu0
        %v2455 = vsel %vm563, %v1158, 0
        %2457 = vmatprep.subr.mxu0 0.0
        %2458 = vmatpush1.msra.mxu0 %v1654
        %2459 = vmatprep.subr.mxu0 0.0
        %2460 = vmatpush1.msra.mxu0 %v1790
        %2461 = vmatprep.subr.mxu0 0.0
        %2462 = vmatpush1.msra.mxu0 0.0
        %2463 = vmatprep.subr.mxu0 0.0
        %2464 = vmatpush1.msra.mxu0 0.0
        %2465 = vmatprep.subr.mxu0 0.0
        %2466 = vmatpush1.msra.mxu0 0.0
        %2467 = vmatprep.subr.mxu0 0.0
        %2468 = vmatpush1.msra.mxu0 0.0
        %2469 = vmatprep.subr.mxu0 0.0
        %2470 = vmatpush1.msra.mxu0 0.0
        %2471 = vmatprep.subr.mxu0 0.0
        %2472 = vmatpush1.msra.mxu0 0.0
        %2473 = vmatprep.subr.mxu0 0.0
        %2474 = vmatpush1.msra.mxu0 0.0
        %2475 = vmatprep.subr.mxu0 0.0
        %2476 = vmatpush1.msra.mxu0 0.0
        %2477 = vmatprep.subr.mxu0 0.0
        %2478 = vmatpush1.msra.mxu0 0.0
        %2479 = vmatprep.subr.mxu0 0.0
        %2480 = vmatpush1.msra.mxu0 0.0
        %2481 = vmatprep.subr.mxu0 0.0
        %2482 = vmatpush1.msra.mxu0 0.0
        %2483 = vmatprep.subr.mxu0 0.0
        %2484 = vmatpush1.msra.mxu0 0.0
        %2485 = vmatprep.subr.mxu0 0.0
        %2486 = vmatpush1.msra.mxu0 0.0
        %2487 = vmatprep.subr.mxu0 0.0
        %2488 = vmatpush1.msra.mxu0 0.0
        %2489 = vmatprep.subr.mxu0 0.0
        %2490 = vmatpush1.msra.mxu0 0.0
        %2491 = vmatprep.subr.mxu0 0.0
        %2492 = vmatpush1.msra.mxu0 0.0
        %2493 = vmatprep.subr.mxu0 0.0
        %2494 = vmatpush1.msra.mxu0 0.0
        %2495 = vmatprep.subr.mxu0 0.0
        %2496 = vmatpush1.msra.mxu0 0.0
        %2497 = vmatprep.subr.mxu0 0.0
        %2498 = vmatpush1.msra.mxu0 0.0
        %2499 = vmatprep.subr.mxu0 0.0
        %2500 = vmatpush1.msra.mxu0 0.0
        %2501 = vmatprep.subr.mxu0 0.0
        %2502 = vmatpush1.msra.mxu0 0.0
        %2503 = vmatprep.subr.mxu0 0.0
        %2504 = vmatpush1.msra.mxu0 0.0
        %2505 = vmatprep.subr.mxu0 0.0
        %2506 = vmatpush1.msra.mxu0 0.0
        %2507 = vmatprep.subr.mxu0 0.0
        %2508 = vmatpush1.msra.mxu0 0.0
        %2509 = vmatprep.subr.mxu0 0.0
        %2510 = vmatpush1.msra.mxu0 0.0
        %2511 = vmatprep.subr.mxu0 0.0
        %2512 = vmatpush1.msra.mxu0 0.0
        %2513 = vmatprep.subr.mxu0 0.0
        %2514 = vmatpush1.msra.mxu0 0.0
        %2515 = vmatprep.subr.mxu0 0.0
        %2516 = vmatpush1.msra.mxu0 0.0
        %2517 = vmatprep.subr.mxu0 0.0
        %2518 = vmatpush1.msra.mxu0 0.0
        %2519 = vmatprep.subr.mxu0 0.0
        %2520 = vmatpush1.msra.mxu0 0.0
        %2521 = vmatprep.mubr.f32.mxu0 0.0
        %2522 = vmatmul.mubr.f32.gmra.mrb[0].mxu0 %v2455
        %v2523 = vpop.f32.mrb[0].mxu0
        %v2524 = vadd.f32 0.0, %v2523
        %v2525 = vpop.f32.mrb[0].mxu0
        %2526 = vdwg.mxu0
        %v2528 = vsel %vm563, %v1159, 0
        %2530 = vmatprep.subr.mxu0 0.0
        %2531 = vmatpush1.msra.mxu0 %v1655
        %2532 = vmatprep.subr.mxu0 0.0
        %2533 = vmatpush1.msra.mxu0 %v1791
        %2534 = vmatprep.subr.mxu0 0.0
        %2535 = vmatpush1.msra.mxu0 0.0
        %2536 = vmatprep.subr.mxu0 0.0
        %2537 = vmatpush1.msra.mxu0 0.0
        %2538 = vmatprep.subr.mxu0 0.0
        %2539 = vmatpush1.msra.mxu0 0.0
        %2540 = vmatprep.subr.mxu0 0.0
        %2541 = vmatpush1.msra.mxu0 0.0
        %2542 = vmatprep.subr.mxu0 0.0
        %2543 = vmatpush1.msra.mxu0 0.0
        %2544 = vmatprep.subr.mxu0 0.0
        %2545 = vmatpush1.msra.mxu0 0.0
        %2546 = vmatprep.subr.mxu0 0.0
        %2547 = vmatpush1.msra.mxu0 0.0
        %2548 = vmatprep.subr.mxu0 0.0
        %2549 = vmatpush1.msra.mxu0 0.0
        %2550 = vmatprep.subr.mxu0 0.0
        %2551 = vmatpush1.msra.mxu0 0.0
        %2552 = vmatprep.subr.mxu0 0.0
        %2553 = vmatpush1.msra.mxu0 0.0
        %2554 = vmatprep.subr.mxu0 0.0
        %2555 = vmatpush1.msra.mxu0 0.0
        %2556 = vmatprep.subr.mxu0 0.0
        %2557 = vmatpush1.msra.mxu0 0.0
        %2558 = vmatprep.subr.mxu0 0.0
        %2559 = vmatpush1.msra.mxu0 0.0
        %2560 = vmatprep.subr.mxu0 0.0
        %2561 = vmatpush1.msra.mxu0 0.0
        %2562 = vmatprep.subr.mxu0 0.0
        %2563 = vmatpush1.msra.mxu0 0.0
        %2564 = vmatprep.subr.mxu0 0.0
        %2565 = vmatpush1.msra.mxu0 0.0
        %2566 = vmatprep.subr.mxu0 0.0
        %2567 = vmatpush1.msra.mxu0 0.0
        %2568 = vmatprep.subr.mxu0 0.0
        %2569 = vmatpush1.msra.mxu0 0.0
        %2570 = vmatprep.subr.mxu0 0.0
        %2571 = vmatpush1.msra.mxu0 0.0
        %2572 = vmatprep.subr.mxu0 0.0
        %2573 = vmatpush1.msra.mxu0 0.0
        %2574 = vmatprep.subr.mxu0 0.0
        %2575 = vmatpush1.msra.mxu0 0.0
        %2576 = vmatprep.subr.mxu0 0.0
        %2577 = vmatpush1.msra.mxu0 0.0
        %2578 = vmatprep.subr.mxu0 0.0
        %2579 = vmatpush1.msra.mxu0 0.0
        %2580 = vmatprep.subr.mxu0 0.0
        %2581 = vmatpush1.msra.mxu0 0.0
        %2582 = vmatprep.subr.mxu0 0.0
        %2583 = vmatpush1.msra.mxu0 0.0
        %2584 = vmatprep.subr.mxu0 0.0
        %2585 = vmatpush1.msra.mxu0 0.0
        %2586 = vmatprep.subr.mxu0 0.0
        %2587 = vmatpush1.msra.mxu0 0.0
        %2588 = vmatprep.subr.mxu0 0.0
        %2589 = vmatpush1.msra.mxu0 0.0
        %2590 = vmatprep.subr.mxu0 0.0
        %2591 = vmatpush1.msra.mxu0 0.0
        %2592 = vmatprep.subr.mxu0 0.0
        %2593 = vmatpush1.msra.mxu0 0.0
        %2594 = vmatprep.mubr.f32.mxu0 0.0
        %2595 = vmatmul.mubr.f32.gmra.mrb[0].mxu0 %v2528
        %v2596 = vpop.f32.mrb[0].mxu0
        %v2597 = vadd.f32 0.0, %v2596
        %v2598 = vpop.f32.mrb[0].mxu0
        %2599 = vdwg.mxu0
        %v2601 = vsel %vm563, %v1160, 0
        %2603 = vmatprep.subr.mxu0 0.0
        %2604 = vmatpush1.msra.mxu0 %v1656
        %2605 = vmatprep.subr.mxu0 0.0
        %2606 = vmatpush1.msra.mxu0 %v1792
        %2607 = vmatprep.subr.mxu0 0.0
        %2608 = vmatpush1.msra.mxu0 0.0
        %2609 = vmatprep.subr.mxu0 0.0
        %2610 = vmatpush1.msra.mxu0 0.0
        %2611 = vmatprep.subr.mxu0 0.0
        %2612 = vmatpush1.msra.mxu0 0.0
        %2613 = vmatprep.subr.mxu0 0.0
        %2614 = vmatpush1.msra.mxu0 0.0
        %2615 = vmatprep.subr.mxu0 0.0
        %2616 = vmatpush1.msra.mxu0 0.0
        %2617 = vmatprep.subr.mxu0 0.0
        %2618 = vmatpush1.msra.mxu0 0.0
        %2619 = vmatprep.subr.mxu0 0.0
        %2620 = vmatpush1.msra.mxu0 0.0
        %2621 = vmatprep.subr.mxu0 0.0
        %2622 = vmatpush1.msra.mxu0 0.0
        %2623 = vmatprep.subr.mxu0 0.0
        %2624 = vmatpush1.msra.mxu0 0.0
        %2625 = vmatprep.subr.mxu0 0.0
        %2626 = vmatpush1.msra.mxu0 0.0
        %2627 = vmatprep.subr.mxu0 0.0
        %2628 = vmatpush1.msra.mxu0 0.0
        %2629 = vmatprep.subr.mxu0 0.0
        %2630 = vmatpush1.msra.mxu0 0.0
        %2631 = vmatprep.subr.mxu0 0.0
        %2632 = vmatpush1.msra.mxu0 0.0
        %2633 = vmatprep.subr.mxu0 0.0
        %2634 = vmatpush1.msra.mxu0 0.0
        %2635 = vmatprep.subr.mxu0 0.0
        %2636 = vmatpush1.msra.mxu0 0.0
        %2637 = vmatprep.subr.mxu0 0.0
        %2638 = vmatpush1.msra.mxu0 0.0
        %2639 = vmatprep.subr.mxu0 0.0
        %2640 = vmatpush1.msra.mxu0 0.0
        %2641 = vmatprep.subr.mxu0 0.0
        %2642 = vmatpush1.msra.mxu0 0.0
        %2643 = vmatprep.subr.mxu0 0.0
        %2644 = vmatpush1.msra.mxu0 0.0
        %2645 = vmatprep.subr.mxu0 0.0
        %2646 = vmatpush1.msra.mxu0 0.0
        %2647 = vmatprep.subr.mxu0 0.0
        %2648 = vmatpush1.msra.mxu0 0.0
        %2649 = vmatprep.subr.mxu0 0.0
        %2650 = vmatpush1.msra.mxu0 0.0
        %2651 = vmatprep.subr.mxu0 0.0
        %2652 = vmatpush1.msra.mxu0 0.0
        %2653 = vmatprep.subr.mxu0 0.0
        %2654 = vmatpush1.msra.mxu0 0.0
        %2655 = vmatprep.subr.mxu0 0.0
        %2656 = vmatpush1.msra.mxu0 0.0
        %2657 = vmatprep.subr.mxu0 0.0
        %2658 = vmatpush1.msra.mxu0 0.0
        %2659 = vmatprep.subr.mxu0 0.0
        %2660 = vmatpush1.msra.mxu0 0.0
        %2661 = vmatprep.subr.mxu0 0.0
        %2662 = vmatpush1.msra.mxu0 0.0
        %2663 = vmatprep.subr.mxu0 0.0
        %2664 = vmatpush1.msra.mxu0 0.0
        %2665 = vmatprep.subr.mxu0 0.0
        %2666 = vmatpush1.msra.mxu0 0.0
        %2667 = vmatprep.mubr.f32.mxu0 0.0
        %2668 = vmatmul.mubr.f32.gmra.mrb[0].mxu0 %v2601
        %v2669 = vpop.f32.mrb[0].mxu0
        %v2670 = vadd.f32 0.0, %v2669
        %v2671 = vpop.f32.mrb[0].mxu0
        %2672 = vdwg.mxu0
        %v2674 = vsel %vm563, %v1161, 0
        %2676 = vmatprep.subr.mxu0 0.0
        %2677 = vmatpush1.msra.mxu0 %v1657
        %2678 = vmatprep.subr.mxu0 0.0
        %2679 = vmatpush1.msra.mxu0 %v1793
        %2680 = vmatprep.subr.mxu0 0.0
        %2681 = vmatpush1.msra.mxu0 0.0
        %2682 = vmatprep.subr.mxu0 0.0
        %2683 = vmatpush1.msra.mxu0 0.0
        %2684 = vmatprep.subr.mxu0 0.0
        %2685 = vmatpush1.msra.mxu0 0.0
        %2686 = vmatprep.subr.mxu0 0.0
        %2687 = vmatpush1.msra.mxu0 0.0
        %2688 = vmatprep.subr.mxu0 0.0
        %2689 = vmatpush1.msra.mxu0 0.0
        %2690 = vmatprep.subr.mxu0 0.0
        %2691 = vmatpush1.msra.mxu0 0.0
        %2692 = vmatprep.subr.mxu0 0.0
        %2693 = vmatpush1.msra.mxu0 0.0
        %2694 = vmatprep.subr.mxu0 0.0
        %2695 = vmatpush1.msra.mxu0 0.0
        %2696 = vmatprep.subr.mxu0 0.0
        %2697 = vmatpush1.msra.mxu0 0.0
        %2698 = vmatprep.subr.mxu0 0.0
        %2699 = vmatpush1.msra.mxu0 0.0
        %2700 = vmatprep.subr.mxu0 0.0
        %2701 = vmatpush1.msra.mxu0 0.0
        %2702 = vmatprep.subr.mxu0 0.0
        %2703 = vmatpush1.msra.mxu0 0.0
        %2704 = vmatprep.subr.mxu0 0.0
        %2705 = vmatpush1.msra.mxu0 0.0
        %2706 = vmatprep.subr.mxu0 0.0
        %2707 = vmatpush1.msra.mxu0 0.0
        %2708 = vmatprep.subr.mxu0 0.0
        %2709 = vmatpush1.msra.mxu0 0.0
        %2710 = vmatprep.subr.mxu0 0.0
        %2711 = vmatpush1.msra.mxu0 0.0
        %2712 = vmatprep.subr.mxu0 0.0
        %2713 = vmatpush1.msra.mxu0 0.0
        %2714 = vmatprep.subr.mxu0 0.0
        %2715 = vmatpush1.msra.mxu0 0.0
        %2716 = vmatprep.subr.mxu0 0.0
        %2717 = vmatpush1.msra.mxu0 0.0
        %2718 = vmatprep.subr.mxu0 0.0
        %2719 = vmatpush1.msra.mxu0 0.0
        %2720 = vmatprep.subr.mxu0 0.0
        %2721 = vmatpush1.msra.mxu0 0.0
        %2722 = vmatprep.subr.mxu0 0.0
        %2723 = vmatpush1.msra.mxu0 0.0
        %2724 = vmatprep.subr.mxu0 0.0
        %2725 = vmatpush1.msra.mxu0 0.0
        %2726 = vmatprep.subr.mxu0 0.0
        %2727 = vmatpush1.msra.mxu0 0.0
        %2728 = vmatprep.subr.mxu0 0.0
        %2729 = vmatpush1.msra.mxu0 0.0
        %2730 = vmatprep.subr.mxu0 0.0
        %2731 = vmatpush1.msra.mxu0 0.0
        %2732 = vmatprep.subr.mxu0 0.0
        %2733 = vmatpush1.msra.mxu0 0.0
        %2734 = vmatprep.subr.mxu0 0.0
        %2735 = vmatpush1.msra.mxu0 0.0
        %2736 = vmatprep.subr.mxu0 0.0
        %2737 = vmatpush1.msra.mxu0 0.0
        %2738 = vmatprep.subr.mxu0 0.0
        %2739 = vmatpush1.msra.mxu0 0.0
        %2740 = vmatprep.mubr.f32.mxu0 0.0
        %2741 = vmatmul.mubr.f32.gmra.mrb[0].mxu0 %v2674
        %v2742 = vpop.f32.mrb[0].mxu0
        %v2743 = vadd.f32 0.0, %v2742
        %v2744 = vpop.f32.mrb[0].mxu0
        %2745 = vdwg.mxu0
        %v2747 = vsel %vm563, %v1162, 0
        %2749 = vmatprep.subr.mxu0 0.0
        %2750 = vmatpush1.msra.mxu0 %v1658
        %2751 = vmatprep.subr.mxu0 0.0
        %2752 = vmatpush1.msra.mxu0 %v1794
        %2753 = vmatprep.subr.mxu0 0.0
        %2754 = vmatpush1.msra.mxu0 0.0
        %2755 = vmatprep.subr.mxu0 0.0
        %2756 = vmatpush1.msra.mxu0 0.0
        %2757 = vmatprep.subr.mxu0 0.0
        %2758 = vmatpush1.msra.mxu0 0.0
        %2759 = vmatprep.subr.mxu0 0.0
        %2760 = vmatpush1.msra.mxu0 0.0
        %2761 = vmatprep.subr.mxu0 0.0
        %2762 = vmatpush1.msra.mxu0 0.0
        %2763 = vmatprep.subr.mxu0 0.0
        %2764 = vmatpush1.msra.mxu0 0.0
        %2765 = vmatprep.subr.mxu0 0.0
        %2766 = vmatpush1.msra.mxu0 0.0
        %2767 = vmatprep.subr.mxu0 0.0
        %2768 = vmatpush1.msra.mxu0 0.0
        %2769 = vmatprep.subr.mxu0 0.0
        %2770 = vmatpush1.msra.mxu0 0.0
        %2771 = vmatprep.subr.mxu0 0.0
        %2772 = vmatpush1.msra.mxu0 0.0
        %2773 = vmatprep.subr.mxu0 0.0
        %2774 = vmatpush1.msra.mxu0 0.0
        %2775 = vmatprep.subr.mxu0 0.0
        %2776 = vmatpush1.msra.mxu0 0.0
        %2777 = vmatprep.subr.mxu0 0.0
        %2778 = vmatpush1.msra.mxu0 0.0
        %2779 = vmatprep.subr.mxu0 0.0
        %2780 = vmatpush1.msra.mxu0 0.0
        %2781 = vmatprep.subr.mxu0 0.0
        %2782 = vmatpush1.msra.mxu0 0.0
        %2783 = vmatprep.subr.mxu0 0.0
        %2784 = vmatpush1.msra.mxu0 0.0
        %2785 = vmatprep.subr.mxu0 0.0
        %2786 = vmatpush1.msra.mxu0 0.0
        %2787 = vmatprep.subr.mxu0 0.0
        %2788 = vmatpush1.msra.mxu0 0.0
        %2789 = vmatprep.subr.mxu0 0.0
        %2790 = vmatpush1.msra.mxu0 0.0
        %2791 = vmatprep.subr.mxu0 0.0
        %2792 = vmatpush1.msra.mxu0 0.0
        %2793 = vmatprep.subr.mxu0 0.0
        %2794 = vmatpush1.msra.mxu0 0.0
        %2795 = vmatprep.subr.mxu0 0.0
        %2796 = vmatpush1.msra.mxu0 0.0
        %2797 = vmatprep.subr.mxu0 0.0
        %2798 = vmatpush1.msra.mxu0 0.0
        %2799 = vmatprep.subr.mxu0 0.0
        %2800 = vmatpush1.msra.mxu0 0.0
        %2801 = vmatprep.subr.mxu0 0.0
        %2802 = vmatpush1.msra.mxu0 0.0
        %2803 = vmatprep.subr.mxu0 0.0
        %2804 = vmatpush1.msra.mxu0 0.0
        %2805 = vmatprep.subr.mxu0 0.0
        %2806 = vmatpush1.msra.mxu0 0.0
        %2807 = vmatprep.subr.mxu0 0.0
        %2808 = vmatpush1.msra.mxu0 0.0
        %2809 = vmatprep.subr.mxu0 0.0
        %2810 = vmatpush1.msra.mxu0 0.0
        %2811 = vmatprep.subr.mxu0 0.0
        %2812 = vmatpush1.msra.mxu0 0.0
        %2813 = vmatprep.mubr.f32.mxu0 0.0
        %2814 = vmatmul.mubr.f32.gmra.mrb[0].mxu0 %v2747
        %v2815 = vpop.f32.mrb[0].mxu0
        %v2816 = vadd.f32 0.0, %v2815
        %v2817 = vpop.f32.mrb[0].mxu0
        %2818 = vdwg.mxu0
        %v2820 = vsel %vm563, %v1163, 0
        %2822 = vmatprep.subr.mxu0 0.0
        %2823 = vmatpush1.msra.mxu0 %v1659
        %2824 = vmatprep.subr.mxu0 0.0
        %2825 = vmatpush1.msra.mxu0 %v1795
        %2826 = vmatprep.subr.mxu0 0.0
        %2827 = vmatpush1.msra.mxu0 0.0
        %2828 = vmatprep.subr.mxu0 0.0
        %2829 = vmatpush1.msra.mxu0 0.0
        %2830 = vmatprep.subr.mxu0 0.0
        %2831 = vmatpush1.msra.mxu0 0.0
        %2832 = vmatprep.subr.mxu0 0.0
        %2833 = vmatpush1.msra.mxu0 0.0
        %2834 = vmatprep.subr.mxu0 0.0
        %2835 = vmatpush1.msra.mxu0 0.0
        %2836 = vmatprep.subr.mxu0 0.0
        %2837 = vmatpush1.msra.mxu0 0.0
        %2838 = vmatprep.subr.mxu0 0.0
        %2839 = vmatpush1.msra.mxu0 0.0
        %2840 = vmatprep.subr.mxu0 0.0
        %2841 = vmatpush1.msra.mxu0 0.0
        %2842 = vmatprep.subr.mxu0 0.0
        %2843 = vmatpush1.msra.mxu0 0.0
        %2844 = vmatprep.subr.mxu0 0.0
        %2845 = vmatpush1.msra.mxu0 0.0
        %2846 = vmatprep.subr.mxu0 0.0
        %2847 = vmatpush1.msra.mxu0 0.0
        %2848 = vmatprep.subr.mxu0 0.0
        %2849 = vmatpush1.msra.mxu0 0.0
        %2850 = vmatprep.subr.mxu0 0.0
        %2851 = vmatpush1.msra.mxu0 0.0
        %2852 = vmatprep.subr.mxu0 0.0
        %2853 = vmatpush1.msra.mxu0 0.0
        %2854 = vmatprep.subr.mxu0 0.0
        %2855 = vmatpush1.msra.mxu0 0.0
        %2856 = vmatprep.subr.mxu0 0.0
        %2857 = vmatpush1.msra.mxu0 0.0
        %2858 = vmatprep.subr.mxu0 0.0
        %2859 = vmatpush1.msra.mxu0 0.0
        %2860 = vmatprep.subr.mxu0 0.0
        %2861 = vmatpush1.msra.mxu0 0.0
        %2862 = vmatprep.subr.mxu0 0.0
        %2863 = vmatpush1.msra.mxu0 0.0
        %2864 = vmatprep.subr.mxu0 0.0
        %2865 = vmatpush1.msra.mxu0 0.0
        %2866 = vmatprep.subr.mxu0 0.0
        %2867 = vmatpush1.msra.mxu0 0.0
        %2868 = vmatprep.subr.mxu0 0.0
        %2869 = vmatpush1.msra.mxu0 0.0
        %2870 = vmatprep.subr.mxu0 0.0
        %2871 = vmatpush1.msra.mxu0 0.0
        %2872 = vmatprep.subr.mxu0 0.0
        %2873 = vmatpush1.msra.mxu0 0.0
        %2874 = vmatprep.subr.mxu0 0.0
        %2875 = vmatpush1.msra.mxu0 0.0
        %2876 = vmatprep.subr.mxu0 0.0
        %2877 = vmatpush1.msra.mxu0 0.0
        %2878 = vmatprep.subr.mxu0 0.0
        %2879 = vmatpush1.msra.mxu0 0.0
        %2880 = vmatprep.subr.mxu0 0.0
        %2881 = vmatpush1.msra.mxu0 0.0
        %2882 = vmatprep.subr.mxu0 0.0
        %2883 = vmatpush1.msra.mxu0 0.0
        %2884 = vmatprep.subr.mxu0 0.0
        %2885 = vmatpush1.msra.mxu0 0.0
        %2886 = vmatprep.mubr.f32.mxu0 0.0
        %2887 = vmatmul.mubr.f32.gmra.mrb[0].mxu0 %v2820
        %v2888 = vpop.f32.mrb[0].mxu0
        %v2889 = vadd.f32 0.0, %v2888
        %v2890 = vpop.f32.mrb[0].mxu0
        %2891 = vdwg.mxu0
        %v2893 = vsel %vm563, %v1164, 0
        %2895 = vmatprep.subr.mxu0 0.0
        %2896 = vmatpush1.msra.mxu0 %v1660
        %2897 = vmatprep.subr.mxu0 0.0
        %2898 = vmatpush1.msra.mxu0 %v1796
        %2899 = vmatprep.subr.mxu0 0.0
        %2900 = vmatpush1.msra.mxu0 0.0
        %2901 = vmatprep.subr.mxu0 0.0
        %2902 = vmatpush1.msra.mxu0 0.0
        %2903 = vmatprep.subr.mxu0 0.0
        %2904 = vmatpush1.msra.mxu0 0.0
        %2905 = vmatprep.subr.mxu0 0.0
        %2906 = vmatpush1.msra.mxu0 0.0
        %2907 = vmatprep.subr.mxu0 0.0
        %2908 = vmatpush1.msra.mxu0 0.0
        %2909 = vmatprep.subr.mxu0 0.0
        %2910 = vmatpush1.msra.mxu0 0.0
        %2911 = vmatprep.subr.mxu0 0.0
        %2912 = vmatpush1.msra.mxu0 0.0
        %2913 = vmatprep.subr.mxu0 0.0
        %2914 = vmatpush1.msra.mxu0 0.0
        %2915 = vmatprep.subr.mxu0 0.0
        %2916 = vmatpush1.msra.mxu0 0.0
        %2917 = vmatprep.subr.mxu0 0.0
        %2918 = vmatpush1.msra.mxu0 0.0
        %2919 = vmatprep.subr.mxu0 0.0
        %2920 = vmatpush1.msra.mxu0 0.0
        %2921 = vmatprep.subr.mxu0 0.0
        %2922 = vmatpush1.msra.mxu0 0.0
        %2923 = vmatprep.subr.mxu0 0.0
        %2924 = vmatpush1.msra.mxu0 0.0
        %2925 = vmatprep.subr.mxu0 0.0
        %2926 = vmatpush1.msra.mxu0 0.0
        %2927 = vmatprep.subr.mxu0 0.0
        %2928 = vmatpush1.msra.mxu0 0.0
        %2929 = vmatprep.subr.mxu0 0.0
        %2930 = vmatpush1.msra.mxu0 0.0
        %2931 = vmatprep.subr.mxu0 0.0
        %2932 = vmatpush1.msra.mxu0 0.0
        %2933 = vmatprep.subr.mxu0 0.0
        %2934 = vmatpush1.msra.mxu0 0.0
        %2935 = vmatprep.subr.mxu0 0.0
        %2936 = vmatpush1.msra.mxu0 0.0
        %2937 = vmatprep.subr.mxu0 0.0
        %2938 = vmatpush1.msra.mxu0 0.0
        %2939 = vmatprep.subr.mxu0 0.0
        %2940 = vmatpush1.msra.mxu0 0.0
        %2941 = vmatprep.subr.mxu0 0.0
        %2942 = vmatpush1.msra.mxu0 0.0
        %2943 = vmatprep.subr.mxu0 0.0
        %2944 = vmatpush1.msra.mxu0 0.0
        %2945 = vmatprep.subr.mxu0 0.0
        %2946 = vmatpush1.msra.mxu0 0.0
        %2947 = vmatprep.subr.mxu0 0.0
        %2948 = vmatpush1.msra.mxu0 0.0
        %2949 = vmatprep.subr.mxu0 0.0
        %2950 = vmatpush1.msra.mxu0 0.0
        %2951 = vmatprep.subr.mxu0 0.0
        %2952 = vmatpush1.msra.mxu0 0.0
        %2953 = vmatprep.subr.mxu0 0.0
        %2954 = vmatpush1.msra.mxu0 0.0
        %2955 = vmatprep.subr.mxu0 0.0
        %2956 = vmatpush1.msra.mxu0 0.0
        %2957 = vmatprep.subr.mxu0 0.0
        %2958 = vmatpush1.msra.mxu0 0.0
        %2959 = vmatprep.mubr.f32.mxu0 0.0
        %2960 = vmatmul.mubr.f32.gmra.mrb[0].mxu0 %v2893
        %v2961 = vpop.f32.mrb[0].mxu0
        %v2962 = vadd.f32 0.0, %v2961
        %v2963 = vpop.f32.mrb[0].mxu0
        %2964 = vdwg.mxu0
        %v2965 = vcombine.low %v1867, %v2013
        %v2966 = vcombine.high %v1867, %v2013
        %v2968 = vunpack.c.l.s4 1983009808
        %v2969 = vunpack.c.0.s8 %v2968
        %v2970 = vlaneseq
        %v2971 = vshrl.u32 %v2970, 7
        %v2972 = vsub.s32 %v2969, %v2971
        %v2973 = vrot.slane %v2965, %v2972
        %v2975 = vunpack.c.l.s4 1983009808
        %v2976 = vunpack.c.0.s8 %v2975
        %v2977 = vlaneseq
        %v2978 = vshrl.u32 %v2977, 7
        %v2979 = vsub.s32 %v2976, %v2978
        %v2980 = vrot.slane %v2966, %v2979
        %v2981 = vcombine.low %v1940, %v2086
        %v2982 = vcombine.high %v1940, %v2086
        %v2984 = vunpack.c.l.s4 1983009808
        %v2985 = vunpack.c.0.s8 %v2984
        %v2986 = vlaneseq
        %v2987 = vshrl.u32 %v2986, 7
        %v2988 = vsub.s32 %v2985, %v2987
        %v2989 = vrot.slane %v2981, %v2988
        %v2991 = vunpack.c.l.s4 1983009808
        %v2992 = vunpack.c.0.s8 %v2991
        %v2993 = vlaneseq
        %v2994 = vshrl.u32 %v2993, 7
        %v2995 = vsub.s32 %v2992, %v2994
        %v2996 = vrot.slane %v2982, %v2995
        %v2997 = vcombine.low %v2159, %v2305
        %v2998 = vcombine.high %v2159, %v2305
        %v3000 = vunpack.c.l.s4 1983009808
        %v3001 = vunpack.c.0.s8 %v3000
        %v3002 = vlaneseq
        %v3003 = vshrl.u32 %v3002, 7
        %v3004 = vsub.s32 %v3001, %v3003
        %v3005 = vrot.slane %v2997, %v3004
        %v3007 = vunpack.c.l.s4 1983009808
        %v3008 = vunpack.c.0.s8 %v3007
        %v3009 = vlaneseq
        %v3010 = vshrl.u32 %v3009, 7
        %v3011 = vsub.s32 %v3008, %v3010
        %v3012 = vrot.slane %v2998, %v3011
        %v3013 = vcombine.low %v2232, %v2378
        %v3014 = vcombine.high %v2232, %v2378
        %v3016 = vunpack.c.l.s4 1983009808
        %v3017 = vunpack.c.0.s8 %v3016
        %v3018 = vlaneseq
        %v3019 = vshrl.u32 %v3018, 7
        %v3020 = vsub.s32 %v3017, %v3019
        %v3021 = vrot.slane %v3013, %v3020
        %v3023 = vunpack.c.l.s4 1983009808
        %v3024 = vunpack.c.0.s8 %v3023
        %v3025 = vlaneseq
        %v3026 = vshrl.u32 %v3025, 7
        %v3027 = vsub.s32 %v3024, %v3026
        %v3028 = vrot.slane %v3014, %v3027
        %v3029 = vcombine.low %v2973, %v2989
        %v3030 = vcombine.high %v2973, %v2989
        %v3032 = vunpack.c.l.s4 1934713408
        %v3033 = vunpack.c.0.s8 %v3032
        %v3034 = vlaneseq
        %v3035 = vshrl.u32 %v3034, 7
        %v3036 = vsub.s32 %v3033, %v3035
        %v3037 = vrot.slane %v3029, %v3036
        %v3039 = vunpack.c.l.s4 1934713408
        %v3040 = vunpack.c.0.s8 %v3039
        %v3041 = vlaneseq
        %v3042 = vshrl.u32 %v3041, 7
        %v3043 = vsub.s32 %v3040, %v3042
        %v3044 = vrot.slane %v3030, %v3043
        %v3045 = vcombine.low %v2980, %v2996
        %v3046 = vcombine.high %v2980, %v2996
        %v3048 = vunpack.c.l.s4 1934713408
        %v3049 = vunpack.c.0.s8 %v3048
        %v3050 = vlaneseq
        %v3051 = vshrl.u32 %v3050, 7
        %v3052 = vsub.s32 %v3049, %v3051
        %v3053 = vrot.slane %v3045, %v3052
        %v3055 = vunpack.c.l.s4 1934713408
        %v3056 = vunpack.c.0.s8 %v3055
        %v3057 = vlaneseq
        %v3058 = vshrl.u32 %v3057, 7
        %v3059 = vsub.s32 %v3056, %v3058
        %v3060 = vrot.slane %v3046, %v3059
        %v3061 = vcombine.low %v3005, %v3021
        %v3062 = vcombine.high %v3005, %v3021
        %v3064 = vunpack.c.l.s4 1934713408
        %v3065 = vunpack.c.0.s8 %v3064
        %v3066 = vlaneseq
        %v3067 = vshrl.u32 %v3066, 7
        %v3068 = vsub.s32 %v3065, %v3067
        %v3069 = vrot.slane %v3061, %v3068
        %v3071 = vunpack.c.l.s4 1934713408
        %v3072 = vunpack.c.0.s8 %v3071
        %v3073 = vlaneseq
        %v3074 = vshrl.u32 %v3073, 7
        %v3075 = vsub.s32 %v3072, %v3074
        %v3076 = vrot.slane %v3062, %v3075
        %v3077 = vcombine.low %v3012, %v3028
        %v3078 = vcombine.high %v3012, %v3028
        %v3080 = vunpack.c.l.s4 1934713408
        %v3081 = vunpack.c.0.s8 %v3080
        %v3082 = vlaneseq
        %v3083 = vshrl.u32 %v3082, 7
        %v3084 = vsub.s32 %v3081, %v3083
        %v3085 = vrot.slane %v3077, %v3084
        %v3087 = vunpack.c.l.s4 1934713408
        %v3088 = vunpack.c.0.s8 %v3087
        %v3089 = vlaneseq
        %v3090 = vshrl.u32 %v3089, 7
        %v3091 = vsub.s32 %v3088, %v3090
        %v3092 = vrot.slane %v3078, %v3091
        %v3093 = vcombine.low %v3037, %v3069
        %v3094 = vcombine.high %v3037, %v3069
        %v3095 = vcombine.low %v3044, %v3076
        %v3096 = vcombine.high %v3044, %v3076
        %v3097 = vcombine.low %v3053, %v3085
        %v3098 = vcombine.high %v3053, %v3085
        %v3099 = vcombine.low %v3060, %v3092
        %v3100 = vcombine.high %v3060, %v3092
        %v3101 = vcombine.low %v2451, %v2597
        %v3102 = vcombine.high %v2451, %v2597
        %v3104 = vunpack.c.l.s4 1983009808
        %v3105 = vunpack.c.0.s8 %v3104
        %v3106 = vlaneseq
        %v3107 = vshrl.u32 %v3106, 7
        %v3108 = vsub.s32 %v3105, %v3107
        %v3109 = vrot.slane %v3101, %v3108
        %v3111 = vunpack.c.l.s4 1983009808
        %v3112 = vunpack.c.0.s8 %v3111
        %v3113 = vlaneseq
        %v3114 = vshrl.u32 %v3113, 7
        %v3115 = vsub.s32 %v3112, %v3114
        %v3116 = vrot.slane %v3102, %v3115
        %v3117 = vcombine.low %v2524, %v2670
        %v3118 = vcombine.high %v2524, %v2670
        %v3120 = vunpack.c.l.s4 1983009808
        %v3121 = vunpack.c.0.s8 %v3120
        %v3122 = vlaneseq
        %v3123 = vshrl.u32 %v3122, 7
        %v3124 = vsub.s32 %v3121, %v3123
        %v3125 = vrot.slane %v3117, %v3124
        %v3127 = vunpack.c.l.s4 1983009808
        %v3128 = vunpack.c.0.s8 %v3127
        %v3129 = vlaneseq
        %v3130 = vshrl.u32 %v3129, 7
        %v3131 = vsub.s32 %v3128, %v3130
        %v3132 = vrot.slane %v3118, %v3131
        %v3133 = vcombine.low %v2743, %v2889
        %v3134 = vcombine.high %v2743, %v2889
        %v3136 = vunpack.c.l.s4 1983009808
        %v3137 = vunpack.c.0.s8 %v3136
        %v3138 = vlaneseq
        %v3139 = vshrl.u32 %v3138, 7
        %v3140 = vsub.s32 %v3137, %v3139
        %v3141 = vrot.slane %v3133, %v3140
        %v3143 = vunpack.c.l.s4 1983009808
        %v3144 = vunpack.c.0.s8 %v3143
        %v3145 = vlaneseq
        %v3146 = vshrl.u32 %v3145, 7
        %v3147 = vsub.s32 %v3144, %v3146
        %v3148 = vrot.slane %v3134, %v3147
        %v3149 = vcombine.low %v2816, %v2962
        %v3150 = vcombine.high %v2816, %v2962
        %v3152 = vunpack.c.l.s4 1983009808
        %v3153 = vunpack.c.0.s8 %v3152
        %v3154 = vlaneseq
        %v3155 = vshrl.u32 %v3154, 7
        %v3156 = vsub.s32 %v3153, %v3155
        %v3157 = vrot.slane %v3149, %v3156
        %v3159 = vunpack.c.l.s4 1983009808
        %v3160 = vunpack.c.0.s8 %v3159
        %v3161 = vlaneseq
        %v3162 = vshrl.u32 %v3161, 7
        %v3163 = vsub.s32 %v3160, %v3162
        %v3164 = vrot.slane %v3150, %v3163
        %v3165 = vcombine.low %v3109, %v3125
        %v3166 = vcombine.high %v3109, %v3125
        %v3168 = vunpack.c.l.s4 1934713408
        %v3169 = vunpack.c.0.s8 %v3168
        %v3170 = vlaneseq
        %v3171 = vshrl.u32 %v3170, 7
        %v3172 = vsub.s32 %v3169, %v3171
        %v3173 = vrot.slane %v3165, %v3172
        %v3175 = vunpack.c.l.s4 1934713408
        %v3176 = vunpack.c.0.s8 %v3175
        %v3177 = vlaneseq
        %v3178 = vshrl.u32 %v3177, 7
        %v3179 = vsub.s32 %v3176, %v3178
        %v3180 = vrot.slane %v3166, %v3179
        %v3181 = vcombine.low %v3116, %v3132
        %v3182 = vcombine.high %v3116, %v3132
        %v3184 = vunpack.c.l.s4 1934713408
        %v3185 = vunpack.c.0.s8 %v3184
        %v3186 = vlaneseq
        %v3187 = vshrl.u32 %v3186, 7
        %v3188 = vsub.s32 %v3185, %v3187
        %v3189 = vrot.slane %v3181, %v3188
        %v3191 = vunpack.c.l.s4 1934713408
        %v3192 = vunpack.c.0.s8 %v3191
        %v3193 = vlaneseq
        %v3194 = vshrl.u32 %v3193, 7
        %v3195 = vsub.s32 %v3192, %v3194
        %v3196 = vrot.slane %v3182, %v3195
        %v3197 = vcombine.low %v3141, %v3157
        %v3198 = vcombine.high %v3141, %v3157
        %v3200 = vunpack.c.l.s4 1934713408
        %v3201 = vunpack.c.0.s8 %v3200
        %v3202 = vlaneseq
        %v3203 = vshrl.u32 %v3202, 7
        %v3204 = vsub.s32 %v3201, %v3203
        %v3205 = vrot.slane %v3197, %v3204
        %v3207 = vunpack.c.l.s4 1934713408
        %v3208 = vunpack.c.0.s8 %v3207
        %v3209 = vlaneseq
        %v3210 = vshrl.u32 %v3209, 7
        %v3211 = vsub.s32 %v3208, %v3210
        %v3212 = vrot.slane %v3198, %v3211
        %v3213 = vcombine.low %v3148, %v3164
        %v3214 = vcombine.high %v3148, %v3164
        %v3216 = vunpack.c.l.s4 1934713408
        %v3217 = vunpack.c.0.s8 %v3216
        %v3218 = vlaneseq
        %v3219 = vshrl.u32 %v3218, 7
        %v3220 = vsub.s32 %v3217, %v3219
        %v3221 = vrot.slane %v3213, %v3220
        %v3223 = vunpack.c.l.s4 1934713408
        %v3224 = vunpack.c.0.s8 %v3223
        %v3225 = vlaneseq
        %v3226 = vshrl.u32 %v3225, 7
        %v3227 = vsub.s32 %v3224, %v3226
        %v3228 = vrot.slane %v3214, %v3227
        %v3229 = vcombine.low %v3173, %v3205
        %v3230 = vcombine.high %v3173, %v3205
        %v3231 = vcombine.low %v3180, %v3212
        %v3232 = vcombine.high %v3180, %v3212
        %v3233 = vcombine.low %v3189, %v3221
        %v3234 = vcombine.high %v3189, %v3221
        %v3235 = vcombine.low %v3196, %v3228
        %v3236 = vcombine.high %v3196, %v3228
        %3239 = vrot.lane.b32.xlu0 %v3094, 16
        %v3240 = vpop.permute.xlu0 %3239
        %3241 = vrot.lane.b32.xlu0 %v3230, 16
        %v3242 = vpop.permute.xlu0 %3241
        %3247 = vrot.lane.b32.xlu0 %v3095, 32
        %v3248 = vpop.permute.xlu0 %3247
        %3249 = vrot.lane.b32.xlu0 %v3231, 32
        %v3250 = vpop.permute.xlu0 %3249
        %3255 = vrot.lane.b32.xlu0 %v3096, 48
        %v3256 = vpop.permute.xlu0 %3255
        %3257 = vrot.lane.b32.xlu0 %v3232, 48
        %v3258 = vpop.permute.xlu0 %3257
        %3263 = vrot.lane.b32.xlu0 %v3097, 64
        %v3264 = vpop.permute.xlu0 %3263
        %3265 = vrot.lane.b32.xlu0 %v3233, 64
        %v3266 = vpop.permute.xlu0 %3265
        %3271 = vrot.lane.b32.xlu0 %v3098, 80
        %v3272 = vpop.permute.xlu0 %3271
        %3273 = vrot.lane.b32.xlu0 %v3234, 80
        %v3274 = vpop.permute.xlu0 %3273
        %3279 = vrot.lane.b32.xlu0 %v3099, 96
        %v3280 = vpop.permute.xlu0 %3279
        %3281 = vrot.lane.b32.xlu0 %v3235, 96
        %v3282 = vpop.permute.xlu0 %3281
        %3287 = vrot.lane.b32.xlu0 %v3100, 112
        %v3288 = vpop.permute.xlu0 %3287
        %3289 = vrot.lane.b32.xlu0 %v3236, 112
        %v3290 = vpop.permute.xlu0 %3289
        %v3293 = vsel %vm563, %v3093, %v3240
        %v3294 = vsel %vm563, %v3229, %v3242
        %v3295 = vsel %vm565, %v3293, %v3248
        %v3296 = vsel %vm565, %v3294, %v3250
        %vm3297 = vcmask 392192
        %v3298 = vsel %vm3297, %v3295, %v3256
        %v3299 = vsel %vm3297, %v3296, %v3258
        %vm3300 = vcmask 523264
        %v3301 = vsel %vm3300, %v3298, %v3264
        %v3302 = vsel %vm3300, %v3299, %v3266
        %vm3303 = vcmask 654336
        %v3304 = vsel %vm3303, %v3301, %v3272
        %v3305 = vsel %vm3303, %v3302, %v3274
        %vm3306 = vcmask 785408
        %v3307 = vsel %vm3306, %v3304, %v3280
        %v3308 = vsel %vm3306, %v3305, %v3282
        %vm3309 = vcmask 916480
        %v3310 = vsel %vm3309, %v3307, %v3288
        %v3311 = vsel %vm3309, %v3308, %v3290
        %3312 = vst [vmem:[%s350] sm:$0xff] %v3310
        %3313 = vst [vmem:[%s350 + $0x8] sm:$0xff] %v3311
        %s3314 = sand.u32 %s247, 1
        %s3315 = scalar_lea.sflag [#allocation3], %s3314
        %s3316 = sand.u32 %s247, 1
        %s3317 = smul.addr %s3316, 16
        %s3318 = scalar_lea.vmem [#allocation2], %s3317
        // Predicated region
        $region61: #{tpu_custom_call.1} parent=59 // pred_check
          %p3319 = pneg %p257
        $region62: #{tpu_custom_call.1} parent=59 // pred_check_branch
          %3321 = sbr.rel (%p3319) target = $region64
        $region63: #{tpu_custom_call.1} parent=59 // pred_region
          %s3323 = ssub.s32 256, 256
          %3324 = vsyncadd %s3315, %s3323
          %s3325 = smul.addr %s24, 2
          %s3326 = smul.addr %s3325, 128
          %s3327 = scalar_lea.hbm %s10, %s3326
          %s3328 = sshll.u32 %s3318, 4
          %s3329 = int_to_ptr.vmem [resolvable:$true] %s3328
          %3334 = dma.vmem_to_hbm [thread:$0]  %s3329, 256, %s3327, %s3315, 128, 128, 8
        $region64: #{tpu_custom_call.1} parent=59 // pred_fallthru
          _
      $region60: #{tpu_custom_call.1} parent=5 // pred_fallthru
        _
      %p3335 = scmp.le.s32.totalorder 2, %s19
      // Predicated region
      $region65: #{tpu_custom_call.1} parent=5 // pred_check
        %p3336 = pneg %p3335
      $region66: #{tpu_custom_call.1} parent=5 // pred_check_branch
        %3338 = sbr.rel (%p3336) target = $region68
      $region67: #{tpu_custom_call.1} parent=5 // pred_region
        %s3339 = ssub.s32 %s19, 2
        // Predicated region
        $region69: #{tpu_custom_call.1} parent=67 // pred_check
          %p3340 = pneg %p263
        $region70: #{tpu_custom_call.1} parent=67 // pred_check_branch
          %3342 = sbr.rel (%p3340) target = $region72
        $region71: #{tpu_custom_call.1} parent=67 // pred_region
          %s3343 = sand.u32 %s248, 1
          %s3344 = scalar_lea.sflag [#allocation3], %s3343
          %s3345 = sand.u32 %s248, 1
          %s3346 = smul.addr %s3345, 16
          %s3347 = scalar_lea.vmem [#allocation2], %s3346
          %3348 = dma.done %s3344, 256
        $region72: #{tpu_custom_call.1} parent=67 // pred_fallthru
          _
      $region68: #{tpu_custom_call.1} parent=5 // pred_fallthru
        _
    $region6: #{tpu_custom_call.1} parent=1 // loop_footer
      %s23 = sadd.s32 1, %s19
    $region7: #{tpu_custom_call.1} parent=1 // loop_footer_branch
      %18 = sbr.rel target = $region3
    $region8: #{tpu_custom_call.1} parent=1 // loop_exit
      _
    %3349 = vsyncpa [#allocation3], 1
    %s3350 = scalar_lea.sflag [#allocation3], 1
    %3351 = vsyncpa %s3350, 1

</llo_original>
